<compile_context>
chip_gen: v5e
topology: v5e:2x2
jax: 0.10.0
libtpu: 0.0.40
codegen_flags: <defaults>
</compile_context>

<pallas_src>
import functools

import jax
import jax.numpy as jnp
from jax.experimental import pallas as pl
from jax.experimental.pallas import tpu as pltpu


# ----------------------------------------------------------------------------
# Fused kernel: all LSTM layers (wavefronted) + final FC in one invocation.
# refs = (x_tm, w_ih0^T, w_hh0^T, b0, [w_merged_l, b_l]*, fc_w^T, fc_b, out)
# ----------------------------------------------------------------------------
def _fused_lstm_fc_kernel(*refs, num_layers, hidden, seq_len, batch):
    T, Bc, H = seq_len, batch, hidden
    x_ref = refs[0]                                   # (T*Bc, D) bf16, time-major
    w_ih0_ref, w_hh0_ref, b0_ref = refs[1], refs[2], refs[3]
    layer_refs = refs[4:4 + 2 * (num_layers - 1)]
    fc_w_ref = refs[4 + 2 * (num_layers - 1)]         # (H, C)  bf16
    fc_b_ref = refs[5 + 2 * (num_layers - 1)]         # (1, C)  f32
    out_ref = refs[6 + 2 * (num_layers - 1)]          # (Bc, C)

    # Hoisted layer-0 input projection: ONE (T*Bc, D) x (D, 4H) bf16 MXU matmul
    # over all timesteps, f32 accumulate, combined bias added once.
    gx0 = (jnp.dot(x_ref[...], w_ih0_ref[...],
                   preferred_element_type=jnp.float32)
           + b0_ref[...])                             # (T*Bc, 4H) f32

    w_hh0 = w_hh0_ref[...]                            # (H, 4H) bf16
    w_m = [layer_refs[2 * i][...] for i in range(num_layers - 1)]      # (2H,4H) bf16
    b_m = [layer_refs[2 * i + 1][...] for i in range(num_layers - 1)]  # (1,4H)  f32

    h = [jnp.zeros((Bc, H), jnp.float32) for _ in range(num_layers)]
    c = [jnp.zeros((Bc, H), jnp.float32) for _ in range(num_layers)]

    def lstm_cell(gates, c_prev):
        # Full-lane-width nonlinearities (EUP), then static per-gate slices.
        sg = jax.nn.sigmoid(gates)
        tg = jnp.tanh(gates)
        i_g = sg[:, 0 * H:1 * H]
        f_g = sg[:, 1 * H:2 * H]
        g_g = tg[:, 2 * H:3 * H]
        o_g = sg[:, 3 * H:4 * H]
        c_new = f_g * c_prev + i_g * g_g
        h_new = o_g * jnp.tanh(c_new)
        return h_new, c_new

    # Wavefront: wave w runs layer l's timestep t = w - l.  Layers are visited
    # high -> low inside a wave so layer l reads h[l-1] at time t (previous wave)
    # before layer l-1 overwrites it with time t+1.
    for w in range(T + num_layers - 1):
        for l in range(num_layers - 1, -1, -1):
            t = w - l
            if t < 0 or t >= T:
                continue
            if l == 0:
                gates = gx0[t * Bc:(t + 1) * Bc, :] + jnp.dot(
                    h[0].astype(jnp.bfloat16), w_hh0,
                    preferred_element_type=jnp.float32)
            else:
                # Merged input+recurrent matmul: (Bc, 2H) x (2H, 4H).
                x_in = jnp.concatenate([h[l - 1], h[l]],
                                       axis=1).astype(jnp.bfloat16)
                gates = jnp.dot(x_in, w_m[l - 1],
                                preferred_element_type=jnp.float32) + b_m[l - 1]
            h[l], c[l] = lstm_cell(gates, c[l])

    # Final Linear on the last timestep's hidden state of the top layer.
    logits = (jnp.dot(h[num_layers - 1].astype(jnp.bfloat16), fc_w_ref[...],
                      preferred_element_type=jnp.float32)
              + fc_b_ref[...])                        # (Bc, C) f32
    out_ref[...] = logits.astype(out_ref.dtype)


# ----------------------------------------------------------------------------
# One-time parameter preparation (transposes / bias combine / layer merge /
# bf16 cast) — hoisted out of the per-forward path.
# ----------------------------------------------------------------------------
def prepare_lstm_params(lstm_params, fc_w, fc_b):
    w_ih0, w_hh0, b_ih0, b_hh0 = lstm_params[0]
    prepped = {
        "w_ih0": w_ih0.T.astype(jnp.bfloat16),                    # (D, 4H)
        "w_hh0": w_hh0.T.astype(jnp.bfloat16),                    # (H, 4H)
        "b0": (b_ih0 + b_hh0).reshape(1, -1).astype(jnp.float32),  # (1, 4H)
        "merged": [],
        "fc_w": fc_w.T.astype(jnp.bfloat16),                      # (H, C)
        "fc_b": fc_b.reshape(1, -1).astype(jnp.float32),          # (1, C)
    }
    for (w_ih, w_hh, b_ih, b_hh) in lstm_params[1:]:
        w_merged = jnp.concatenate([w_ih.T, w_hh.T],
                                   axis=0).astype(jnp.bfloat16)   # (2H, 4H)
        b_merged = (b_ih + b_hh).reshape(1, -1).astype(jnp.float32)
        prepped["merged"].append((w_merged, b_merged))
    return prepped


# ----------------------------------------------------------------------------
# Wrapper: matches PyTorch  out, _ = lstm(x); out = fc(out[:, -1, :])
# num_batch_blocks > 1 (with B % num_batch_blocks == 0) shards the batch across
# grid iterations — useful on v7x (2 TensorCores); keep 1 on v5e/v6e.
# ----------------------------------------------------------------------------
def custom_lstm_forward(x_btd, params, *, num_batch_blocks=1):
    B, T, D = x_btd.shape
    H = params["w_hh0"].shape[0]
    C = params["fc_w"].shape[1]
    num_layers = 1 + len(params["merged"])
    G = num_batch_blocks
    assert B % G == 0
    Bc = B // G

    # Time-major (per batch block) reorder + bf16 cast done by XLA in the
    # wrapper (tiny; overlaps with the weight DMAs).
    x_tm = (x_btd.reshape(G, Bc, T, D)
            .transpose(0, 2, 1, 3)
            .reshape(G, T * Bc, D)
            .astype(jnp.bfloat16))

    inputs = [x_tm, params["w_ih0"], params["w_hh0"], params["b0"]]
    in_specs = [
        pl.BlockSpec((None, T * Bc, D), lambda g: (g, 0, 0)),
        pl.BlockSpec(params["w_ih0"].shape, lambda g: (0, 0)),
        pl.BlockSpec(params["w_hh0"].shape, lambda g: (0, 0)),
        pl.BlockSpec(params["b0"].shape, lambda g: (0, 0)),
    ]
    for (w_merged, b_merged) in params["merged"]:
        inputs += [w_merged, b_merged]
        in_specs += [pl.BlockSpec(w_merged.shape, lambda g: (0, 0)),
                     pl.BlockSpec(b_merged.shape, lambda g: (0, 0))]
    inputs += [params["fc_w"], params["fc_b"]]
    in_specs += [pl.BlockSpec(params["fc_w"].shape, lambda g: (0, 0)),
                 pl.BlockSpec(params["fc_b"].shape, lambda g: (0, 0))]

    kernel = functools.partial(_fused_lstm_fc_kernel, num_layers=num_layers,
                               hidden=H, seq_len=T, batch=Bc)
    out = pl.pallas_call(
        kernel,
        out_shape=jax.ShapeDtypeStruct((G, Bc, C), jnp.float32),
        grid=(G,),
        in_specs=in_specs,
        out_specs=pl.BlockSpec((None, Bc, C), lambda g: (g, 0, 0)),
        compiler_params=pltpu.CompilerParams(
            dimension_semantics=("parallel",)),
    )(*inputs)
    return out.reshape(B, C).astype(x_btd.dtype)


# ----------------------------------------------------------------------------
# Pure-JAX f32 reference (same math as nn.LSTM + fc) for a correctness check.
# ----------------------------------------------------------------------------
def reference_forward(x_btd, lstm_params, fc_w, fc_b):
    h_seq = x_btd
    B = x_btd.shape[0]
    for (w_ih, w_hh, b_ih, b_hh) in lstm_params:
        H = w_hh.shape[1]

        def step(carry, x_t):
            h, c = carry
            gates = x_t @ w_ih.T + h @ w_hh.T + b_ih + b_hh
            i_g, f_g, g_g, o_g = jnp.split(gates, 4, axis=-1)
            i_g = jax.nn.sigmoid(i_g)
            f_g = jax.nn.sigmoid(f_g)
            g_g = jnp.tanh(g_g)
            o_g = jax.nn.sigmoid(o_g)
            c = f_g * c + i_g * g_g
            h = o_g * jnp.tanh(c)
            return (h, c), h

        init = (jnp.zeros((B, H), jnp.float32), jnp.zeros((B, H), jnp.float32))
        _, hs = jax.lax.scan(step, init, jnp.transpose(h_seq, (1, 0, 2)))
        h_seq = jnp.transpose(hs, (1, 0, 2))
    return h_seq[:, -1, :] @ fc_w.T + fc_b


# ----------------------------------------------------------------------------
if __name__ == "__main__":
    B, T = 2, 8
    INPUT_SIZE, HIDDEN_SIZE, NUM_LAYERS, NUM_CLASSES = 16, 32, 2, 10

    key = jax.random.PRNGKey(0)
    keys = iter(jax.random.split(key, 4 * NUM_LAYERS + 3))

    # PyTorch-style uniform(-1/sqrt(H), 1/sqrt(H)) init.
    k = 1.0 / jnp.sqrt(jnp.float32(HIDDEN_SIZE))
    lstm_params = []
    for layer in range(NUM_LAYERS):
        in_dim = INPUT_SIZE if layer == 0 else HIDDEN_SIZE
        w_ih = jax.random.uniform(next(keys), (4 * HIDDEN_SIZE, in_dim),
                                  jnp.float32, -k, k)
        w_hh = jax.random.uniform(next(keys), (4 * HIDDEN_SIZE, HIDDEN_SIZE),
                                  jnp.float32, -k, k)
        b_ih = jax.random.uniform(next(keys), (4 * HIDDEN_SIZE,),
                                  jnp.float32, -k, k)
        b_hh = jax.random.uniform(next(keys), (4 * HIDDEN_SIZE,),
                                  jnp.float32, -k, k)
        lstm_params.append((w_ih, w_hh, b_ih, b_hh))

    fc_w = jax.random.uniform(next(keys), (NUM_CLASSES, HIDDEN_SIZE),
                              jnp.float32, -k, k)
    fc_b = jax.random.uniform(next(keys), (NUM_CLASSES,), jnp.float32, -k, k)

    x = jax.random.normal(next(keys), (B, T, INPUT_SIZE), jnp.float32)

    # One-time parameter prep (transposes / merges / bf16 cast) — reused across
    # forward calls.
    prepped = prepare_lstm_params(lstm_params, fc_w, fc_b)

    fwd = jax.jit(custom_lstm_forward)
    out = jax.block_until_ready(fwd(x, prepped))

    ref = jax.block_until_ready(reference_forward(x, lstm_params, fc_w, fc_b))
    assert out.shape == (B, NUM_CLASSES)
    # bf16 MXU operands (f32 accumulation) -> looser tolerance than pure f32.
    assert jnp.allclose(out, ref, atol=5e-2, rtol=5e-2), (out, ref)

    print("KERNEL_OK")
</pallas_src>

<mosaic_0001>
module attributes {stable_mosaic.version = 11 : i64} {
  func.func @_fused_lstm_fc_kernel(%arg0: i32, %arg1: memref<1x16x16xbf16, #tpu.memory_space<vmem>>, %arg2: memref<16x128xbf16, #tpu.memory_space<vmem>>, %arg3: memref<32x128xbf16, #tpu.memory_space<vmem>>, %arg4: memref<1x128xf32, #tpu.memory_space<vmem>>, %arg5: memref<64x128xbf16, #tpu.memory_space<vmem>>, %arg6: memref<1x128xf32, #tpu.memory_space<vmem>>, %arg7: memref<32x10xbf16, #tpu.memory_space<vmem>>, %arg8: memref<1x10xf32, #tpu.memory_space<vmem>>, %arg9: memref<1x2x10xf32, #tpu.memory_space<vmem>>) attributes {dimension_semantics = [#tpu.dimension_semantics<parallel>], iteration_bounds = array<i64: 1>, scalar_prefetch = 0 : i64, scratch_operands = 0 : i64, tpu.core_type = #tpu.core_type<tc>, window_params = [{transform_indices = @transform_0, window_bounds = array<i64: 1, 16, 16>}, {pipeline_mode = #tpu.pipeline_mode<synchronous>, transform_indices = @transform_1, window_bounds = array<i64: 16, 128>}, {pipeline_mode = #tpu.pipeline_mode<synchronous>, transform_indices = @transform_2, window_bounds = array<i64: 32, 128>}, {pipeline_mode = #tpu.pipeline_mode<synchronous>, transform_indices = @transform_3, window_bounds = array<i64: 1, 128>}, {pipeline_mode = #tpu.pipeline_mode<synchronous>, transform_indices = @transform_4, window_bounds = array<i64: 64, 128>}, {pipeline_mode = #tpu.pipeline_mode<synchronous>, transform_indices = @transform_5, window_bounds = array<i64: 1, 128>}, {pipeline_mode = #tpu.pipeline_mode<synchronous>, transform_indices = @transform_6, window_bounds = array<i64: 32, 10>}, {pipeline_mode = #tpu.pipeline_mode<synchronous>, transform_indices = @transform_7, window_bounds = array<i64: 1, 10>}, {transform_indices = @transform_8, window_bounds = array<i64: 1, 2, 10>}]} {
    %c0 = arith.constant 0 : index
    %c0_0 = arith.constant 0 : index
    %c0_1 = arith.constant 0 : index
    %0 = vector.load %arg1[%c0, %c0_0, %c0_1] : memref<1x16x16xbf16, #tpu.memory_space<vmem>>, vector<1x16x16xbf16>
    %1 = vector.shape_cast %0 : vector<1x16x16xbf16> to vector<16x16xbf16>
    %c0_2 = arith.constant 0 : index
    %c0_3 = arith.constant 0 : index
    %2 = vector.load %arg2[%c0_2, %c0_3] : memref<16x128xbf16, #tpu.memory_space<vmem>>, vector<16x128xbf16>
    %cst = arith.constant dense<0.000000e+00> : vector<16x128xf32>
    %3 = tpu.matmul %1, %2, %cst {dimension_numbers = #tpu.dot_dimension_numbers<[1], [0], [0], [1], [0, 0, 1, 1], [], []>} : vector<16x16xbf16>, vector<16x128xbf16>, vector<16x128xf32> -> vector<16x128xf32>
    %c0_4 = arith.constant 0 : index
    %c0_5 = arith.constant 0 : index
    %4 = vector.load %arg4[%c0_4, %c0_5] : memref<1x128xf32, #tpu.memory_space<vmem>>, vector<1x128xf32>
    %5 = vector.broadcast %4 : vector<1x128xf32> to vector<16x128xf32>
    %6 = arith.addf %3, %5 : vector<16x128xf32>
    %c0_6 = arith.constant 0 : index
    %c0_7 = arith.constant 0 : index
    %7 = vector.load %arg3[%c0_6, %c0_7] : memref<32x128xbf16, #tpu.memory_space<vmem>>, vector<32x128xbf16>
    %c0_8 = arith.constant 0 : index
    %c0_9 = arith.constant 0 : index
    %8 = vector.load %arg5[%c0_8, %c0_9] : memref<64x128xbf16, #tpu.memory_space<vmem>>, vector<64x128xbf16>
    %c0_10 = arith.constant 0 : index
    %c0_11 = arith.constant 0 : index
    %9 = vector.load %arg6[%c0_10, %c0_11] : memref<1x128xf32, #tpu.memory_space<vmem>>, vector<1x128xf32>
    %cst_12 = arith.constant 0.000000e+00 : f32
    %10 = vector.broadcast %cst_12 : f32 to vector<2x32xf32>
    %cst_13 = arith.constant 0.000000e+00 : f32
    %11 = vector.broadcast %cst_13 : f32 to vector<2x32xf32>
    %cst_14 = arith.constant 0.000000e+00 : f32
    %12 = vector.broadcast %cst_14 : f32 to vector<2x32xf32>
    %cst_15 = arith.constant 0.000000e+00 : f32
    %13 = vector.broadcast %cst_15 : f32 to vector<2x32xf32>
    %14 = vector.extract_strided_slice %6 {offsets = [0, 0], sizes = [2, 128], strides = [1, 1]} : vector<16x128xf32> to vector<2x128xf32>
    %15 = arith.truncf %10 : vector<2x32xf32> to vector<2x32xbf16>
    %cst_16 = arith.constant dense<0.000000e+00> : vector<2x128xf32>
    %16 = tpu.matmul %15, %7, %cst_16 {dimension_numbers = #tpu.dot_dimension_numbers<[1], [0], [0], [1], [0, 0, 1, 1], [], []>} : vector<2x32xbf16>, vector<32x128xbf16>, vector<2x128xf32> -> vector<2x128xf32>
    %17 = arith.addf %14, %16 : vector<2x128xf32>
    %18 = arith.negf %17 : vector<2x128xf32>
    %19 = math.exp %18 : vector<2x128xf32>
    %cst_17 = arith.constant 1.000000e+00 : f32
    %20 = vector.broadcast %cst_17 : f32 to vector<2x128xf32>
    %21 = arith.addf %20, %19 : vector<2x128xf32>
    %22 = arith.divf %20, %21 : vector<2x128xf32>
    %23 = math.tanh %17 : vector<2x128xf32>
    %24 = vector.extract_strided_slice %22 {offsets = [0, 0], sizes = [2, 32], strides = [1, 1]} : vector<2x128xf32> to vector<2x32xf32>
    %25 = vector.extract_strided_slice %22 {offsets = [0, 32], sizes = [2, 32], strides = [1, 1]} : vector<2x128xf32> to vector<2x32xf32>
    %26 = vector.extract_strided_slice %23 {offsets = [0, 64], sizes = [2, 32], strides = [1, 1]} : vector<2x128xf32> to vector<2x32xf32>
    %27 = vector.extract_strided_slice %22 {offsets = [0, 96], sizes = [2, 32], strides = [1, 1]} : vector<2x128xf32> to vector<2x32xf32>
    %28 = arith.mulf %25, %12 : vector<2x32xf32>
    %29 = arith.mulf %24, %26 : vector<2x32xf32>
    %30 = arith.addf %28, %29 : vector<2x32xf32>
    %31 = math.tanh %30 : vector<2x32xf32>
    %32 = arith.mulf %27, %31 : vector<2x32xf32>
    %33 = tpu.concatenate %32, %11 in 1 : vector<2x32xf32>, vector<2x32xf32> -> vector<2x64xf32>
    %34 = arith.truncf %33 : vector<2x64xf32> to vector<2x64xbf16>
    %cst_18 = arith.constant dense<0.000000e+00> : vector<2x128xf32>
    %35 = tpu.matmul %34, %8, %cst_18 {dimension_numbers = #tpu.dot_dimension_numbers<[1], [0], [0], [1], [0, 0, 1, 1], [], []>} : vector<2x64xbf16>, vector<64x128xbf16>, vector<2x128xf32> -> vector<2x128xf32>
    %36 = vector.broadcast %9 : vector<1x128xf32> to vector<2x128xf32>
    %37 = arith.addf %35, %36 : vector<2x128xf32>
    %38 = arith.negf %37 : vector<2x128xf32>
    %39 = math.exp %38 : vector<2x128xf32>
    %cst_19 = arith.constant 1.000000e+00 : f32
    %40 = vector.broadcast %cst_19 : f32 to vector<2x128xf32>
    %41 = arith.addf %40, %39 : vector<2x128xf32>
    %42 = arith.divf %40, %41 : vector<2x128xf32>
    %43 = math.tanh %37 : vector<2x128xf32>
    %44 = vector.extract_strided_slice %42 {offsets = [0, 0], sizes = [2, 32], strides = [1, 1]} : vector<2x128xf32> to vector<2x32xf32>
    %45 = vector.extract_strided_slice %42 {offsets = [0, 32], sizes = [2, 32], strides = [1, 1]} : vector<2x128xf32> to vector<2x32xf32>
    %46 = vector.extract_strided_slice %43 {offsets = [0, 64], sizes = [2, 32], strides = [1, 1]} : vector<2x128xf32> to vector<2x32xf32>
    %47 = vector.extract_strided_slice %42 {offsets = [0, 96], sizes = [2, 32], strides = [1, 1]} : vector<2x128xf32> to vector<2x32xf32>
    %48 = arith.mulf %45, %13 : vector<2x32xf32>
    %49 = arith.mulf %44, %46 : vector<2x32xf32>
    %50 = arith.addf %48, %49 : vector<2x32xf32>
    %51 = math.tanh %50 : vector<2x32xf32>
    %52 = arith.mulf %47, %51 : vector<2x32xf32>
    %53 = vector.extract_strided_slice %6 {offsets = [2, 0], sizes = [2, 128], strides = [1, 1]} : vector<16x128xf32> to vector<2x128xf32>
    %54 = arith.truncf %32 : vector<2x32xf32> to vector<2x32xbf16>
    %cst_20 = arith.constant dense<0.000000e+00> : vector<2x128xf32>
    %55 = tpu.matmul %54, %7, %cst_20 {dimension_numbers = #tpu.dot_dimension_numbers<[1], [0], [0], [1], [0, 0, 1, 1], [], []>} : vector<2x32xbf16>, vector<32x128xbf16>, vector<2x128xf32> -> vector<2x128xf32>
    %56 = arith.addf %53, %55 : vector<2x128xf32>
    %57 = arith.negf %56 : vector<2x128xf32>
    %58 = math.exp %57 : vector<2x128xf32>
    %cst_21 = arith.constant 1.000000e+00 : f32
    %59 = vector.broadcast %cst_21 : f32 to vector<2x128xf32>
    %60 = arith.addf %59, %58 : vector<2x128xf32>
    %61 = arith.divf %59, %60 : vector<2x128xf32>
    %62 = math.tanh %56 : vector<2x128xf32>
    %63 = vector.extract_strided_slice %61 {offsets = [0, 0], sizes = [2, 32], strides = [1, 1]} : vector<2x128xf32> to vector<2x32xf32>
    %64 = vector.extract_strided_slice %61 {offsets = [0, 32], sizes = [2, 32], strides = [1, 1]} : vector<2x128xf32> to vector<2x32xf32>
    %65 = vector.extract_strided_slice %62 {offsets = [0, 64], sizes = [2, 32], strides = [1, 1]} : vector<2x128xf32> to vector<2x32xf32>
    %66 = vector.extract_strided_slice %61 {offsets = [0, 96], sizes = [2, 32], strides = [1, 1]} : vector<2x128xf32> to vector<2x32xf32>
    %67 = arith.mulf %64, %30 : vector<2x32xf32>
    %68 = arith.mulf %63, %65 : vector<2x32xf32>
    %69 = arith.addf %67, %68 : vector<2x32xf32>
    %70 = math.tanh %69 : vector<2x32xf32>
    %71 = arith.mulf %66, %70 : vector<2x32xf32>
    %72 = tpu.concatenate %71, %52 in 1 : vector<2x32xf32>, vector<2x32xf32> -> vector<2x64xf32>
    %73 = arith.truncf %72 : vector<2x64xf32> to vector<2x64xbf16>
    %cst_22 = arith.constant dense<0.000000e+00> : vector<2x128xf32>
    %74 = tpu.matmul %73, %8, %cst_22 {dimension_numbers = #tpu.dot_dimension_numbers<[1], [0], [0], [1], [0, 0, 1, 1], [], []>} : vector<2x64xbf16>, vector<64x128xbf16>, vector<2x128xf32> -> vector<2x128xf32>
    %75 = vector.broadcast %9 : vector<1x128xf32> to vector<2x128xf32>
    %76 = arith.addf %74, %75 : vector<2x128xf32>
    %77 = arith.negf %76 : vector<2x128xf32>
    %78 = math.exp %77 : vector<2x128xf32>
    %cst_23 = arith.constant 1.000000e+00 : f32
    %79 = vector.broadcast %cst_23 : f32 to vector<2x128xf32>
    %80 = arith.addf %79, %78 : vector<2x128xf32>
    %81 = arith.divf %79, %80 : vector<2x128xf32>
    %82 = math.tanh %76 : vector<2x128xf32>
    %83 = vector.extract_strided_slice %81 {offsets = [0, 0], sizes = [2, 32], strides = [1, 1]} : vector<2x128xf32> to vector<2x32xf32>
    %84 = vector.extract_strided_slice %81 {offsets = [0, 32], sizes = [2, 32], strides = [1, 1]} : vector<2x128xf32> to vector<2x32xf32>
    %85 = vector.extract_strided_slice %82 {offsets = [0, 64], sizes = [2, 32], strides = [1, 1]} : vector<2x128xf32> to vector<2x32xf32>
    %86 = vector.extract_strided_slice %81 {offsets = [0, 96], sizes = [2, 32], strides = [1, 1]} : vector<2x128xf32> to vector<2x32xf32>
    %87 = arith.mulf %84, %50 : vector<2x32xf32>
    %88 = arith.mulf %83, %85 : vector<2x32xf32>
    %89 = arith.addf %87, %88 : vector<2x32xf32>
    %90 = math.tanh %89 : vector<2x32xf32>
    %91 = arith.mulf %86, %90 : vector<2x32xf32>
    %92 = vector.extract_strided_slice %6 {offsets = [4, 0], sizes = [2, 128], strides = [1, 1]} : vector<16x128xf32> to vector<2x128xf32>
    %93 = arith.truncf %71 : vector<2x32xf32> to vector<2x32xbf16>
    %cst_24 = arith.constant dense<0.000000e+00> : vector<2x128xf32>
    %94 = tpu.matmul %93, %7, %cst_24 {dimension_numbers = #tpu.dot_dimension_numbers<[1], [0], [0], [1], [0, 0, 1, 1], [], []>} : vector<2x32xbf16>, vector<32x128xbf16>, vector<2x128xf32> -> vector<2x128xf32>
    %95 = arith.addf %92, %94 : vector<2x128xf32>
    %96 = arith.negf %95 : vector<2x128xf32>
    %97 = math.exp %96 : vector<2x128xf32>
    %cst_25 = arith.constant 1.000000e+00 : f32
    %98 = vector.broadcast %cst_25 : f32 to vector<2x128xf32>
    %99 = arith.addf %98, %97 : vector<2x128xf32>
    %100 = arith.divf %98, %99 : vector<2x128xf32>
    %101 = math.tanh %95 : vector<2x128xf32>
    %102 = vector.extract_strided_slice %100 {offsets = [0, 0], sizes = [2, 32], strides = [1, 1]} : vector<2x128xf32> to vector<2x32xf32>
    %103 = vector.extract_strided_slice %100 {offsets = [0, 32], sizes = [2, 32], strides = [1, 1]} : vector<2x128xf32> to vector<2x32xf32>
    %104 = vector.extract_strided_slice %101 {offsets = [0, 64], sizes = [2, 32], strides = [1, 1]} : vector<2x128xf32> to vector<2x32xf32>
    %105 = vector.extract_strided_slice %100 {offsets = [0, 96], sizes = [2, 32], strides = [1, 1]} : vector<2x128xf32> to vector<2x32xf32>
    %106 = arith.mulf %103, %69 : vector<2x32xf32>
    %107 = arith.mulf %102, %104 : vector<2x32xf32>
    %108 = arith.addf %106, %107 : vector<2x32xf32>
    %109 = math.tanh %108 : vector<2x32xf32>
    %110 = arith.mulf %105, %109 : vector<2x32xf32>
    %111 = tpu.concatenate %110, %91 in 1 : vector<2x32xf32>, vector<2x32xf32> -> vector<2x64xf32>
    %112 = arith.truncf %111 : vector<2x64xf32> to vector<2x64xbf16>
    %cst_26 = arith.constant dense<0.000000e+00> : vector<2x128xf32>
    %113 = tpu.matmul %112, %8, %cst_26 {dimension_numbers = #tpu.dot_dimension_numbers<[1], [0], [0], [1], [0, 0, 1, 1], [], []>} : vector<2x64xbf16>, vector<64x128xbf16>, vector<2x128xf32> -> vector<2x128xf32>
    %114 = vector.broadcast %9 : vector<1x128xf32> to vector<2x128xf32>
    %115 = arith.addf %113, %114 : vector<2x128xf32>
    %116 = arith.negf %115 : vector<2x128xf32>
    %117 = math.exp %116 : vector<2x128xf32>
    %cst_27 = arith.constant 1.000000e+00 : f32
    %118 = vector.broadcast %cst_27 : f32 to vector<2x128xf32>
    %119 = arith.addf %118, %117 : vector<2x128xf32>
    %120 = arith.divf %118, %119 : vector<2x128xf32>
    %121 = math.tanh %115 : vector<2x128xf32>
    %122 = vector.extract_strided_slice %120 {offsets = [0, 0], sizes = [2, 32], strides = [1, 1]} : vector<2x128xf32> to vector<2x32xf32>
    %123 = vector.extract_strided_slice %120 {offsets = [0, 32], sizes = [2, 32], strides = [1, 1]} : vector<2x128xf32> to vector<2x32xf32>
    %124 = vector.extract_strided_slice %121 {offsets = [0, 64], sizes = [2, 32], strides = [1, 1]} : vector<2x128xf32> to vector<2x32xf32>
    %125 = vector.extract_strided_slice %120 {offsets = [0, 96], sizes = [2, 32], strides = [1, 1]} : vector<2x128xf32> to vector<2x32xf32>
    %126 = arith.mulf %123, %89 : vector<2x32xf32>
    %127 = arith.mulf %122, %124 : vector<2x32xf32>
    %128 = arith.addf %126, %127 : vector<2x32xf32>
    %129 = math.tanh %128 : vector<2x32xf32>
    %130 = arith.mulf %125, %129 : vector<2x32xf32>
    %131 = vector.extract_strided_slice %6 {offsets = [6, 0], sizes = [2, 128], strides = [1, 1]} : vector<16x128xf32> to vector<2x128xf32>
    %132 = arith.truncf %110 : vector<2x32xf32> to vector<2x32xbf16>
    %cst_28 = arith.constant dense<0.000000e+00> : vector<2x128xf32>
    %133 = tpu.matmul %132, %7, %cst_28 {dimension_numbers = #tpu.dot_dimension_numbers<[1], [0], [0], [1], [0, 0, 1, 1], [], []>} : vector<2x32xbf16>, vector<32x128xbf16>, vector<2x128xf32> -> vector<2x128xf32>
    %134 = arith.addf %131, %133 : vector<2x128xf32>
    %135 = arith.negf %134 : vector<2x128xf32>
    %136 = math.exp %135 : vector<2x128xf32>
    %cst_29 = arith.constant 1.000000e+00 : f32
    %137 = vector.broadcast %cst_29 : f32 to vector<2x128xf32>
    %138 = arith.addf %137, %136 : vector<2x128xf32>
    %139 = arith.divf %137, %138 : vector<2x128xf32>
    %140 = math.tanh %134 : vector<2x128xf32>
    %141 = vector.extract_strided_slice %139 {offsets = [0, 0], sizes = [2, 32], strides = [1, 1]} : vector<2x128xf32> to vector<2x32xf32>
    %142 = vector.extract_strided_slice %139 {offsets = [0, 32], sizes = [2, 32], strides = [1, 1]} : vector<2x128xf32> to vector<2x32xf32>
    %143 = vector.extract_strided_slice %140 {offsets = [0, 64], sizes = [2, 32], strides = [1, 1]} : vector<2x128xf32> to vector<2x32xf32>
    %144 = vector.extract_strided_slice %139 {offsets = [0, 96], sizes = [2, 32], strides = [1, 1]} : vector<2x128xf32> to vector<2x32xf32>
    %145 = arith.mulf %142, %108 : vector<2x32xf32>
    %146 = arith.mulf %141, %143 : vector<2x32xf32>
    %147 = arith.addf %145, %146 : vector<2x32xf32>
    %148 = math.tanh %147 : vector<2x32xf32>
    %149 = arith.mulf %144, %148 : vector<2x32xf32>
    %150 = tpu.concatenate %149, %130 in 1 : vector<2x32xf32>, vector<2x32xf32> -> vector<2x64xf32>
    %151 = arith.truncf %150 : vector<2x64xf32> to vector<2x64xbf16>
    %cst_30 = arith.constant dense<0.000000e+00> : vector<2x128xf32>
    %152 = tpu.matmul %151, %8, %cst_30 {dimension_numbers = #tpu.dot_dimension_numbers<[1], [0], [0], [1], [0, 0, 1, 1], [], []>} : vector<2x64xbf16>, vector<64x128xbf16>, vector<2x128xf32> -> vector<2x128xf32>
    %153 = vector.broadcast %9 : vector<1x128xf32> to vector<2x128xf32>
    %154 = arith.addf %152, %153 : vector<2x128xf32>
    %155 = arith.negf %154 : vector<2x128xf32>
    %156 = math.exp %155 : vector<2x128xf32>
    %cst_31 = arith.constant 1.000000e+00 : f32
    %157 = vector.broadcast %cst_31 : f32 to vector<2x128xf32>
    %158 = arith.addf %157, %156 : vector<2x128xf32>
    %159 = arith.divf %157, %158 : vector<2x128xf32>
    %160 = math.tanh %154 : vector<2x128xf32>
    %161 = vector.extract_strided_slice %159 {offsets = [0, 0], sizes = [2, 32], strides = [1, 1]} : vector<2x128xf32> to vector<2x32xf32>
    %162 = vector.extract_strided_slice %159 {offsets = [0, 32], sizes = [2, 32], strides = [1, 1]} : vector<2x128xf32> to vector<2x32xf32>
    %163 = vector.extract_strided_slice %160 {offsets = [0, 64], sizes = [2, 32], strides = [1, 1]} : vector<2x128xf32> to vector<2x32xf32>
    %164 = vector.extract_strided_slice %159 {offsets = [0, 96], sizes = [2, 32], strides = [1, 1]} : vector<2x128xf32> to vector<2x32xf32>
    %165 = arith.mulf %162, %128 : vector<2x32xf32>
    %166 = arith.mulf %161, %163 : vector<2x32xf32>
    %167 = arith.addf %165, %166 : vector<2x32xf32>
    %168 = math.tanh %167 : vector<2x32xf32>
    %169 = arith.mulf %164, %168 : vector<2x32xf32>
    %170 = vector.extract_strided_slice %6 {offsets = [8, 0], sizes = [2, 128], strides = [1, 1]} : vector<16x128xf32> to vector<2x128xf32>
    %171 = arith.truncf %149 : vector<2x32xf32> to vector<2x32xbf16>
    %cst_32 = arith.constant dense<0.000000e+00> : vector<2x128xf32>
    %172 = tpu.matmul %171, %7, %cst_32 {dimension_numbers = #tpu.dot_dimension_numbers<[1], [0], [0], [1], [0, 0, 1, 1], [], []>} : vector<2x32xbf16>, vector<32x128xbf16>, vector<2x128xf32> -> vector<2x128xf32>
    %173 = arith.addf %170, %172 : vector<2x128xf32>
    %174 = arith.negf %173 : vector<2x128xf32>
    %175 = math.exp %174 : vector<2x128xf32>
    %cst_33 = arith.constant 1.000000e+00 : f32
    %176 = vector.broadcast %cst_33 : f32 to vector<2x128xf32>
    %177 = arith.addf %176, %175 : vector<2x128xf32>
    %178 = arith.divf %176, %177 : vector<2x128xf32>
    %179 = math.tanh %173 : vector<2x128xf32>
    %180 = vector.extract_strided_slice %178 {offsets = [0, 0], sizes = [2, 32], strides = [1, 1]} : vector<2x128xf32> to vector<2x32xf32>
    %181 = vector.extract_strided_slice %178 {offsets = [0, 32], sizes = [2, 32], strides = [1, 1]} : vector<2x128xf32> to vector<2x32xf32>
    %182 = vector.extract_strided_slice %179 {offsets = [0, 64], sizes = [2, 32], strides = [1, 1]} : vector<2x128xf32> to vector<2x32xf32>
    %183 = vector.extract_strided_slice %178 {offsets = [0, 96], sizes = [2, 32], strides = [1, 1]} : vector<2x128xf32> to vector<2x32xf32>
    %184 = arith.mulf %181, %147 : vector<2x32xf32>
    %185 = arith.mulf %180, %182 : vector<2x32xf32>
    %186 = arith.addf %184, %185 : vector<2x32xf32>
    %187 = math.tanh %186 : vector<2x32xf32>
    %188 = arith.mulf %183, %187 : vector<2x32xf32>
    %189 = tpu.concatenate %188, %169 in 1 : vector<2x32xf32>, vector<2x32xf32> -> vector<2x64xf32>
    %190 = arith.truncf %189 : vector<2x64xf32> to vector<2x64xbf16>
    %cst_34 = arith.constant dense<0.000000e+00> : vector<2x128xf32>
    %191 = tpu.matmul %190, %8, %cst_34 {dimension_numbers = #tpu.dot_dimension_numbers<[1], [0], [0], [1], [0, 0, 1, 1], [], []>} : vector<2x64xbf16>, vector<64x128xbf16>, vector<2x128xf32> -> vector<2x128xf32>
    %192 = vector.broadcast %9 : vector<1x128xf32> to vector<2x128xf32>
    %193 = arith.addf %191, %192 : vector<2x128xf32>
    %194 = arith.negf %193 : vector<2x128xf32>
    %195 = math.exp %194 : vector<2x128xf32>
    %cst_35 = arith.constant 1.000000e+00 : f32
    %196 = vector.broadcast %cst_35 : f32 to vector<2x128xf32>
    %197 = arith.addf %196, %195 : vector<2x128xf32>
    %198 = arith.divf %196, %197 : vector<2x128xf32>
    %199 = math.tanh %193 : vector<2x128xf32>
    %200 = vector.extract_strided_slice %198 {offsets = [0, 0], sizes = [2, 32], strides = [1, 1]} : vector<2x128xf32> to vector<2x32xf32>
    %201 = vector.extract_strided_slice %198 {offsets = [0, 32], sizes = [2, 32], strides = [1, 1]} : vector<2x128xf32> to vector<2x32xf32>
    %202 = vector.extract_strided_slice %199 {offsets = [0, 64], sizes = [2, 32], strides = [1, 1]} : vector<2x128xf32> to vector<2x32xf32>
    %203 = vector.extract_strided_slice %198 {offsets = [0, 96], sizes = [2, 32], strides = [1, 1]} : vector<2x128xf32> to vector<2x32xf32>
    %204 = arith.mulf %201, %167 : vector<2x32xf32>
    %205 = arith.mulf %200, %202 : vector<2x32xf32>
    %206 = arith.addf %204, %205 : vector<2x32xf32>
    %207 = math.tanh %206 : vector<2x32xf32>
    %208 = arith.mulf %203, %207 : vector<2x32xf32>
    %209 = vector.extract_strided_slice %6 {offsets = [10, 0], sizes = [2, 128], strides = [1, 1]} : vector<16x128xf32> to vector<2x128xf32>
    %210 = arith.truncf %188 : vector<2x32xf32> to vector<2x32xbf16>
    %cst_36 = arith.constant dense<0.000000e+00> : vector<2x128xf32>
    %211 = tpu.matmul %210, %7, %cst_36 {dimension_numbers = #tpu.dot_dimension_numbers<[1], [0], [0], [1], [0, 0, 1, 1], [], []>} : vector<2x32xbf16>, vector<32x128xbf16>, vector<2x128xf32> -> vector<2x128xf32>
    %212 = arith.addf %209, %211 : vector<2x128xf32>
    %213 = arith.negf %212 : vector<2x128xf32>
    %214 = math.exp %213 : vector<2x128xf32>
    %cst_37 = arith.constant 1.000000e+00 : f32
    %215 = vector.broadcast %cst_37 : f32 to vector<2x128xf32>
    %216 = arith.addf %215, %214 : vector<2x128xf32>
    %217 = arith.divf %215, %216 : vector<2x128xf32>
    %218 = math.tanh %212 : vector<2x128xf32>
    %219 = vector.extract_strided_slice %217 {offsets = [0, 0], sizes = [2, 32], strides = [1, 1]} : vector<2x128xf32> to vector<2x32xf32>
    %220 = vector.extract_strided_slice %217 {offsets = [0, 32], sizes = [2, 32], strides = [1, 1]} : vector<2x128xf32> to vector<2x32xf32>
    %221 = vector.extract_strided_slice %218 {offsets = [0, 64], sizes = [2, 32], strides = [1, 1]} : vector<2x128xf32> to vector<2x32xf32>
    %222 = vector.extract_strided_slice %217 {offsets = [0, 96], sizes = [2, 32], strides = [1, 1]} : vector<2x128xf32> to vector<2x32xf32>
    %223 = arith.mulf %220, %186 : vector<2x32xf32>
    %224 = arith.mulf %219, %221 : vector<2x32xf32>
    %225 = arith.addf %223, %224 : vector<2x32xf32>
    %226 = math.tanh %225 : vector<2x32xf32>
    %227 = arith.mulf %222, %226 : vector<2x32xf32>
    %228 = tpu.concatenate %227, %208 in 1 : vector<2x32xf32>, vector<2x32xf32> -> vector<2x64xf32>
    %229 = arith.truncf %228 : vector<2x64xf32> to vector<2x64xbf16>
    %cst_38 = arith.constant dense<0.000000e+00> : vector<2x128xf32>
    %230 = tpu.matmul %229, %8, %cst_38 {dimension_numbers = #tpu.dot_dimension_numbers<[1], [0], [0], [1], [0, 0, 1, 1], [], []>} : vector<2x64xbf16>, vector<64x128xbf16>, vector<2x128xf32> -> vector<2x128xf32>
    %231 = vector.broadcast %9 : vector<1x128xf32> to vector<2x128xf32>
    %232 = arith.addf %230, %231 : vector<2x128xf32>
    %233 = arith.negf %232 : vector<2x128xf32>
    %234 = math.exp %233 : vector<2x128xf32>
    %cst_39 = arith.constant 1.000000e+00 : f32
    %235 = vector.broadcast %cst_39 : f32 to vector<2x128xf32>
    %236 = arith.addf %235, %234 : vector<2x128xf32>
    %237 = arith.divf %235, %236 : vector<2x128xf32>
    %238 = math.tanh %232 : vector<2x128xf32>
    %239 = vector.extract_strided_slice %237 {offsets = [0, 0], sizes = [2, 32], strides = [1, 1]} : vector<2x128xf32> to vector<2x32xf32>
    %240 = vector.extract_strided_slice %237 {offsets = [0, 32], sizes = [2, 32], strides = [1, 1]} : vector<2x128xf32> to vector<2x32xf32>
    %241 = vector.extract_strided_slice %238 {offsets = [0, 64], sizes = [2, 32], strides = [1, 1]} : vector<2x128xf32> to vector<2x32xf32>
    %242 = vector.extract_strided_slice %237 {offsets = [0, 96], sizes = [2, 32], strides = [1, 1]} : vector<2x128xf32> to vector<2x32xf32>
    %243 = arith.mulf %240, %206 : vector<2x32xf32>
    %244 = arith.mulf %239, %241 : vector<2x32xf32>
    %245 = arith.addf %243, %244 : vector<2x32xf32>
    %246 = math.tanh %245 : vector<2x32xf32>
    %247 = arith.mulf %242, %246 : vector<2x32xf32>
    %248 = vector.extract_strided_slice %6 {offsets = [12, 0], sizes = [2, 128], strides = [1, 1]} : vector<16x128xf32> to vector<2x128xf32>
    %249 = arith.truncf %227 : vector<2x32xf32> to vector<2x32xbf16>
    %cst_40 = arith.constant dense<0.000000e+00> : vector<2x128xf32>
    %250 = tpu.matmul %249, %7, %cst_40 {dimension_numbers = #tpu.dot_dimension_numbers<[1], [0], [0], [1], [0, 0, 1, 1], [], []>} : vector<2x32xbf16>, vector<32x128xbf16>, vector<2x128xf32> -> vector<2x128xf32>
    %251 = arith.addf %248, %250 : vector<2x128xf32>
    %252 = arith.negf %251 : vector<2x128xf32>
    %253 = math.exp %252 : vector<2x128xf32>
    %cst_41 = arith.constant 1.000000e+00 : f32
    %254 = vector.broadcast %cst_41 : f32 to vector<2x128xf32>
    %255 = arith.addf %254, %253 : vector<2x128xf32>
    %256 = arith.divf %254, %255 : vector<2x128xf32>
    %257 = math.tanh %251 : vector<2x128xf32>
    %258 = vector.extract_strided_slice %256 {offsets = [0, 0], sizes = [2, 32], strides = [1, 1]} : vector<2x128xf32> to vector<2x32xf32>
    %259 = vector.extract_strided_slice %256 {offsets = [0, 32], sizes = [2, 32], strides = [1, 1]} : vector<2x128xf32> to vector<2x32xf32>
    %260 = vector.extract_strided_slice %257 {offsets = [0, 64], sizes = [2, 32], strides = [1, 1]} : vector<2x128xf32> to vector<2x32xf32>
    %261 = vector.extract_strided_slice %256 {offsets = [0, 96], sizes = [2, 32], strides = [1, 1]} : vector<2x128xf32> to vector<2x32xf32>
    %262 = arith.mulf %259, %225 : vector<2x32xf32>
    %263 = arith.mulf %258, %260 : vector<2x32xf32>
    %264 = arith.addf %262, %263 : vector<2x32xf32>
    %265 = math.tanh %264 : vector<2x32xf32>
    %266 = arith.mulf %261, %265 : vector<2x32xf32>
    %267 = tpu.concatenate %266, %247 in 1 : vector<2x32xf32>, vector<2x32xf32> -> vector<2x64xf32>
    %268 = arith.truncf %267 : vector<2x64xf32> to vector<2x64xbf16>
    %cst_42 = arith.constant dense<0.000000e+00> : vector<2x128xf32>
    %269 = tpu.matmul %268, %8, %cst_42 {dimension_numbers = #tpu.dot_dimension_numbers<[1], [0], [0], [1], [0, 0, 1, 1], [], []>} : vector<2x64xbf16>, vector<64x128xbf16>, vector<2x128xf32> -> vector<2x128xf32>
    %270 = vector.broadcast %9 : vector<1x128xf32> to vector<2x128xf32>
    %271 = arith.addf %269, %270 : vector<2x128xf32>
    %272 = arith.negf %271 : vector<2x128xf32>
    %273 = math.exp %272 : vector<2x128xf32>
    %cst_43 = arith.constant 1.000000e+00 : f32
    %274 = vector.broadcast %cst_43 : f32 to vector<2x128xf32>
    %275 = arith.addf %274, %273 : vector<2x128xf32>
    %276 = arith.divf %274, %275 : vector<2x128xf32>
    %277 = math.tanh %271 : vector<2x128xf32>
    %278 = vector.extract_strided_slice %276 {offsets = [0, 0], sizes = [2, 32], strides = [1, 1]} : vector<2x128xf32> to vector<2x32xf32>
    %279 = vector.extract_strided_slice %276 {offsets = [0, 32], sizes = [2, 32], strides = [1, 1]} : vector<2x128xf32> to vector<2x32xf32>
    %280 = vector.extract_strided_slice %277 {offsets = [0, 64], sizes = [2, 32], strides = [1, 1]} : vector<2x128xf32> to vector<2x32xf32>
    %281 = vector.extract_strided_slice %276 {offsets = [0, 96], sizes = [2, 32], strides = [1, 1]} : vector<2x128xf32> to vector<2x32xf32>
    %282 = arith.mulf %279, %245 : vector<2x32xf32>
    %283 = arith.mulf %278, %280 : vector<2x32xf32>
    %284 = arith.addf %282, %283 : vector<2x32xf32>
    %285 = math.tanh %284 : vector<2x32xf32>
    %286 = arith.mulf %281, %285 : vector<2x32xf32>
    %287 = vector.extract_strided_slice %6 {offsets = [14, 0], sizes = [2, 128], strides = [1, 1]} : vector<16x128xf32> to vector<2x128xf32>
    %288 = arith.truncf %266 : vector<2x32xf32> to vector<2x32xbf16>
    %cst_44 = arith.constant dense<0.000000e+00> : vector<2x128xf32>
    %289 = tpu.matmul %288, %7, %cst_44 {dimension_numbers = #tpu.dot_dimension_numbers<[1], [0], [0], [1], [0, 0, 1, 1], [], []>} : vector<2x32xbf16>, vector<32x128xbf16>, vector<2x128xf32> -> vector<2x128xf32>
    %290 = arith.addf %287, %289 : vector<2x128xf32>
    %291 = arith.negf %290 : vector<2x128xf32>
    %292 = math.exp %291 : vector<2x128xf32>
    %cst_45 = arith.constant 1.000000e+00 : f32
    %293 = vector.broadcast %cst_45 : f32 to vector<2x128xf32>
    %294 = arith.addf %293, %292 : vector<2x128xf32>
    %295 = arith.divf %293, %294 : vector<2x128xf32>
    %296 = math.tanh %290 : vector<2x128xf32>
    %297 = vector.extract_strided_slice %295 {offsets = [0, 0], sizes = [2, 32], strides = [1, 1]} : vector<2x128xf32> to vector<2x32xf32>
    %298 = vector.extract_strided_slice %295 {offsets = [0, 32], sizes = [2, 32], strides = [1, 1]} : vector<2x128xf32> to vector<2x32xf32>
    %299 = vector.extract_strided_slice %296 {offsets = [0, 64], sizes = [2, 32], strides = [1, 1]} : vector<2x128xf32> to vector<2x32xf32>
    %300 = vector.extract_strided_slice %295 {offsets = [0, 96], sizes = [2, 32], strides = [1, 1]} : vector<2x128xf32> to vector<2x32xf32>
    %301 = arith.mulf %298, %264 : vector<2x32xf32>
    %302 = arith.mulf %297, %299 : vector<2x32xf32>
    %303 = arith.addf %301, %302 : vector<2x32xf32>
    %304 = math.tanh %303 : vector<2x32xf32>
    %305 = arith.mulf %300, %304 : vector<2x32xf32>
    %306 = tpu.concatenate %305, %286 in 1 : vector<2x32xf32>, vector<2x32xf32> -> vector<2x64xf32>
    %307 = arith.truncf %306 : vector<2x64xf32> to vector<2x64xbf16>
    %cst_46 = arith.constant dense<0.000000e+00> : vector<2x128xf32>
    %308 = tpu.matmul %307, %8, %cst_46 {dimension_numbers = #tpu.dot_dimension_numbers<[1], [0], [0], [1], [0, 0, 1, 1], [], []>} : vector<2x64xbf16>, vector<64x128xbf16>, vector<2x128xf32> -> vector<2x128xf32>
    %309 = vector.broadcast %9 : vector<1x128xf32> to vector<2x128xf32>
    %310 = arith.addf %308, %309 : vector<2x128xf32>
    %311 = arith.negf %310 : vector<2x128xf32>
    %312 = math.exp %311 : vector<2x128xf32>
    %cst_47 = arith.constant 1.000000e+00 : f32
    %313 = vector.broadcast %cst_47 : f32 to vector<2x128xf32>
    %314 = arith.addf %313, %312 : vector<2x128xf32>
    %315 = arith.divf %313, %314 : vector<2x128xf32>
    %316 = math.tanh %310 : vector<2x128xf32>
    %317 = vector.extract_strided_slice %315 {offsets = [0, 0], sizes = [2, 32], strides = [1, 1]} : vector<2x128xf32> to vector<2x32xf32>
    %318 = vector.extract_strided_slice %315 {offsets = [0, 32], sizes = [2, 32], strides = [1, 1]} : vector<2x128xf32> to vector<2x32xf32>
    %319 = vector.extract_strided_slice %316 {offsets = [0, 64], sizes = [2, 32], strides = [1, 1]} : vector<2x128xf32> to vector<2x32xf32>
    %320 = vector.extract_strided_slice %315 {offsets = [0, 96], sizes = [2, 32], strides = [1, 1]} : vector<2x128xf32> to vector<2x32xf32>
    %321 = arith.mulf %318, %284 : vector<2x32xf32>
    %322 = arith.mulf %317, %319 : vector<2x32xf32>
    %323 = arith.addf %321, %322 : vector<2x32xf32>
    %324 = math.tanh %323 : vector<2x32xf32>
    %325 = arith.mulf %320, %324 : vector<2x32xf32>
    %326 = arith.truncf %325 : vector<2x32xf32> to vector<2x32xbf16>
    %c0_48 = arith.constant 0 : index
    %c0_49 = arith.constant 0 : index
    %327 = vector.load %arg7[%c0_48, %c0_49] : memref<32x10xbf16, #tpu.memory_space<vmem>>, vector<32x10xbf16>
    %cst_50 = arith.constant dense<0.000000e+00> : vector<2x10xf32>
    %328 = tpu.matmul %326, %327, %cst_50 {dimension_numbers = #tpu.dot_dimension_numbers<[1], [0], [0], [1], [0, 0, 1, 1], [], []>} : vector<2x32xbf16>, vector<32x10xbf16>, vector<2x10xf32> -> vector<2x10xf32>
    %c0_51 = arith.constant 0 : index
    %c0_52 = arith.constant 0 : index
    %329 = vector.load %arg8[%c0_51, %c0_52] : memref<1x10xf32, #tpu.memory_space<vmem>>, vector<1x10xf32>
    %330 = vector.broadcast %329 : vector<1x10xf32> to vector<2x10xf32>
    %331 = arith.addf %328, %330 : vector<2x10xf32>
    %c0_53 = arith.constant 0 : index
    %c0_54 = arith.constant 0 : index
    %c0_55 = arith.constant 0 : index
    %332 = vector.load %arg9[%c0_53, %c0_54, %c0_55] : memref<1x2x10xf32, #tpu.memory_space<vmem>>, vector<1x2x10xf32>
    %333 = vector.shape_cast %332 : vector<1x2x10xf32> to vector<2x10xf32>
    %334 = vector.shape_cast %331 : vector<2x10xf32> to vector<1x2x10xf32>
    tpu.vector_store %arg9[%c0_53, %c0_54, %c0_55], %334 {strides = array<i32>} : memref<1x2x10xf32, #tpu.memory_space<vmem>>, vector<1x2x10xf32>,
    return
  }
  func.func @transform_0(%arg0: i32) -> (i32, i32, i32) {
    %c0_i32 = arith.constant 0 : i32
    %c0_i32_0 = arith.constant 0 : i32
    %c0_i32_1 = arith.constant 0 : i32
    return %arg0, %c0_i32, %c0_i32_0 : i32, i32, i32
  }
  func.func @transform_1(%arg0: i32) -> (i32, i32) {
    %c0_i32 = arith.constant 0 : i32
    %c0_i32_0 = arith.constant 0 : i32
    %c0_i32_1 = arith.constant 0 : i32
    return %c0_i32, %c0_i32_0 : i32, i32
  }
  func.func @transform_2(%arg0: i32) -> (i32, i32) {
    %c0_i32 = arith.constant 0 : i32
    %c0_i32_0 = arith.constant 0 : i32
    %c0_i32_1 = arith.constant 0 : i32
    return %c0_i32, %c0_i32_0 : i32, i32
  }
  func.func @transform_3(%arg0: i32) -> (i32, i32) {
    %c0_i32 = arith.constant 0 : i32
    %c0_i32_0 = arith.constant 0 : i32
    %c0_i32_1 = arith.constant 0 : i32
    return %c0_i32, %c0_i32_0 : i32, i32
  }
  func.func @transform_4(%arg0: i32) -> (i32, i32) {
    %c0_i32 = arith.constant 0 : i32
    %c0_i32_0 = arith.constant 0 : i32
    %c0_i32_1 = arith.constant 0 : i32
    return %c0_i32, %c0_i32_0 : i32, i32
  }
  func.func @transform_5(%arg0: i32) -> (i32, i32) {
    %c0_i32 = arith.constant 0 : i32
    %c0_i32_0 = arith.constant 0 : i32
    %c0_i32_1 = arith.constant 0 : i32
    return %c0_i32, %c0_i32_0 : i32, i32
  }
  func.func @transform_6(%arg0: i32) -> (i32, i32) {
    %c0_i32 = arith.constant 0 : i32
    %c0_i32_0 = arith.constant 0 : i32
    %c0_i32_1 = arith.constant 0 : i32
    return %c0_i32, %c0_i32_0 : i32, i32
  }
  func.func @transform_7(%arg0: i32) -> (i32, i32) {
    %c0_i32 = arith.constant 0 : i32
    %c0_i32_0 = arith.constant 0 : i32
    %c0_i32_1 = arith.constant 0 : i32
    return %c0_i32, %c0_i32_0 : i32, i32
  }
  func.func @transform_8(%arg0: i32) -> (i32, i32, i32) {
    %c0_i32 = arith.constant 0 : i32
    %c0_i32_0 = arith.constant 0 : i32
    %c0_i32_1 = arith.constant 0 : i32
    return %arg0, %c0_i32, %c0_i32_0 : i32, i32, i32
  }
}

</mosaic_0001>

<llo_original>
// kernel: custom_lstm_forward.1
$region0: #{custom_lstm_forward.1}
  #allocation0 [shape = 'u32[]', space=smem, size = 0x4, offset = 0x4, fixed_abs, tag = 'smem constant byte address 0x4 - core index']
  #allocation1 [shape = 'u32[72,128]{1,0:T(1,128)}', space=vmem, size = 0x9000, scoped, tag = 'internal scratch']
  %s0 = inlined_call_operand.vmem [shape: bf16[1,16,16], index: 0, kind: input, shape index: {}]
  %s1 = inlined_call_operand.vmem [shape: bf16[16,128], index: 1, kind: input, shape index: {}]
  %s2 = inlined_call_operand.vmem [shape: bf16[32,128], index: 2, kind: input, shape index: {}]
  %s3 = inlined_call_operand.vmem [shape: f32[1,128], index: 3, kind: input, shape index: {}]
  %s4 = inlined_call_operand.vmem [shape: bf16[64,128], index: 4, kind: input, shape index: {}]
  %s5 = inlined_call_operand.vmem [shape: f32[1,128], index: 5, kind: input, shape index: {}]
  %s6 = inlined_call_operand.vmem [shape: bf16[32,10], index: 6, kind: input, shape index: {}]
  %s7 = inlined_call_operand.hbm [shape: f32[1,10], index: 7, kind: input, shape index: {}]
  %s8 = inlined_call_operand.hbm [shape: f32[1,2,10], index: 8, kind: output, shape index: {}]
  %s9 = sld [smem:[#allocation0]]
  $region46: #{custom_lstm_forward.1} parent=0
    _
  %s11 = ssub.s32 1, %s9
  %s12 = scalar_select 0, %s11, %s9
  $region1: #{custom_lstm_forward.1} parent=0
    #allocation2 [shape = 'u8[512]{0}', space=vmem, size = 0x400, scoped, tag = 'input window, operand 7, single buffered']
    #allocation3 [shape = 's32[1]{0}', space=sflag, size = 0x4, scoped, tag = 'scoped memory for custom_lstm_forward.1']
    #allocation4 [shape = 's32[1]{0}', space=sflag, size = 0x4, scoped, tag = 'scoped memory for custom_lstm_forward.1']
    #allocation5 [shape = 'u8[1024]{0}', space=vmem, size = 0x400, scoped, tag = 'output window, operand 0, single buffered']
    %13 = vsyncpa [#allocation3], 0
    %14 = vsyncpa [#allocation4], 0
    // Predicated region
    $region2: #{custom_lstm_forward.1} parent=1 // pred_check
      _
    $region3: #{custom_lstm_forward.1} parent=1 // pred_check_branch
      %16 = sbr.rel (0) target = $region5
    $region4: #{custom_lstm_forward.1} parent=1 // pred_region
      _
    $region5: #{custom_lstm_forward.1} parent=1 // pred_fallthru
      _
    // Predicated region
    $region6: #{custom_lstm_forward.1} parent=1 // pred_check
      _
    $region7: #{custom_lstm_forward.1} parent=1 // pred_check_branch
      %18 = sbr.rel (0) target = $region9
    $region8: #{custom_lstm_forward.1} parent=1 // pred_region
      _
    $region9: #{custom_lstm_forward.1} parent=1 // pred_fallthru
      _
    // Predicated region
    $region10: #{custom_lstm_forward.1} parent=1 // pred_check
      _
    $region11: #{custom_lstm_forward.1} parent=1 // pred_check_branch
      %20 = sbr.rel (0) target = $region13
    $region12: #{custom_lstm_forward.1} parent=1 // pred_region
      _
    $region13: #{custom_lstm_forward.1} parent=1 // pred_fallthru
      _
    // Predicated region
    $region14: #{custom_lstm_forward.1} parent=1 // pred_check
      _
    $region15: #{custom_lstm_forward.1} parent=1 // pred_check_branch
      %22 = sbr.rel (0) target = $region17
    $region16: #{custom_lstm_forward.1} parent=1 // pred_region
      _
    $region17: #{custom_lstm_forward.1} parent=1 // pred_fallthru
      _
    // Predicated region
    $region18: #{custom_lstm_forward.1} parent=1 // pred_check
      _
    $region19: #{custom_lstm_forward.1} parent=1 // pred_check_branch
      %24 = sbr.rel (0) target = $region21
    $region20: #{custom_lstm_forward.1} parent=1 // pred_region
      _
    $region21: #{custom_lstm_forward.1} parent=1 // pred_fallthru
      _
    // Predicated region
    $region22: #{custom_lstm_forward.1} parent=1 // pred_check
      _
    $region23: #{custom_lstm_forward.1} parent=1 // pred_check_branch
      %26 = sbr.rel (0) target = $region25
    $region24: #{custom_lstm_forward.1} parent=1 // pred_region
      _
    $region25: #{custom_lstm_forward.1} parent=1 // pred_fallthru
      _
    // Predicated region
    $region26: #{custom_lstm_forward.1} parent=1 // pred_check
      _
    $region27: #{custom_lstm_forward.1} parent=1 // pred_check_branch
      %28 = sbr.rel (0) target = $region29
    $region28: #{custom_lstm_forward.1} parent=1 // pred_region
      _
    $region29: #{custom_lstm_forward.1} parent=1 // pred_fallthru
      _
    // Predicated region
    $region30: #{custom_lstm_forward.1} parent=1 // pred_check
      _
    $region31: #{custom_lstm_forward.1} parent=1 // pred_check_branch
      %30 = sbr.rel (0) target = $region33
    $region32: #{custom_lstm_forward.1} parent=1 // pred_region
      %32 = vsyncadd [#allocation3], 0
      %s34 = sshll.u32 %s7, 4
      %s35 = int_to_ptr.hbm [resolvable:$true] %s34
      %s36 = sshll.u32 [#allocation2], 4
      %s37 = int_to_ptr.vmem [resolvable:$true] %s36
      %39 = dma.hbm_to_vmem [thread:$0]  %s35, 16, %s37, [#allocation3]
    $region33: #{custom_lstm_forward.1} parent=1 // pred_fallthru
      _
    // Predicated region
    $region34: #{custom_lstm_forward.1} parent=1 // pred_check
      _
    $region35: #{custom_lstm_forward.1} parent=1 // pred_check_branch
      %41 = sbr.rel (0) target = $region37
    $region36: #{custom_lstm_forward.1} parent=1 // pred_region
      %43 = dma.done [#allocation3], 16
    $region37: #{custom_lstm_forward.1} parent=1 // pred_fallthru
      _
    %v45 = vld [vmem:[%s0] sm:$0xf]
    %v46 = vld [vmem:[%s0 + $0x4] sm:$0xf]
    %v47 = vld [vmem:[%s1] sm:$0xf]
    %v48 = vld [vmem:[%s1 + $0x4] sm:$0xf]
    %v49 = vld [vmem:[%s3] sm:$0x1]
    %v51 = vperm.slane %v49, 0
    %v55 = vunpack.c.l.b16 %v45
    %v56 = vunpack.c.l.b16 %v46
    %v57 = vpack.c.b16 %v56, %v55
    %v60 = vunpack.c.l.b16 %v47
    %v61 = vunpack.c.l.b16 %v48
    %v62 = vpack.c.b16 %v61, %v60
    %vm64 = vcmask 130048
    %v66 = vsel %vm64, %v57, 0
    %68 = vmatpush.bf16.msra.mxu0 0
    %69 = vmatpush.bf16.msra.mxu0 0
    %70 = vmatpush.bf16.msra.mxu0 0
    %71 = vmatpush.bf16.msra.mxu0 0
    %72 = vmatpush.bf16.msra.mxu0 0
    %73 = vmatpush.bf16.msra.mxu0 0
    %74 = vmatpush.bf16.msra.mxu0 0
    %75 = vmatpush.bf16.msra.mxu0 %v62
    %76 = vmatmul.bf16.gmra.mxu0 %v66
    %v77 = vpop.f32.mrf.mxu0
    %v78 = vadd.f32 %v51, %v77
    %v79 = vpop.f32.mrf.mxu0
    %v80 = vadd.f32 %v51, %v79
    %81 = vdwg.mxu0
    %v82 = vld [vmem:[%s2] sm:$0xf]
    %v83 = vld [vmem:[%s2 + $0x4] sm:$0xf]
    %v84 = vld [vmem:[%s2 + $0x8] sm:$0xf]
    %v85 = vld [vmem:[%s2 + $0xc] sm:$0xf]
    %v86 = vld [vmem:[%s4] sm:$0xf]
    %v87 = vld [vmem:[%s4 + $0x4] sm:$0xf]
    %v88 = vld [vmem:[%s4 + $0x8] sm:$0xf]
    %v89 = vld [vmem:[%s4 + $0xc] sm:$0xf]
    %v90 = vld [vmem:[%s4 + $0x10] sm:$0xf]
    %v91 = vld [vmem:[%s4 + $0x14] sm:$0xf]
    %v92 = vld [vmem:[%s4 + $0x18] sm:$0xf]
    %v93 = vld [vmem:[%s4 + $0x1c] sm:$0xf]
    %v94 = vld [vmem:[%s5] sm:$0x1]
    %v99 = vunpack.c.l.b16 %v82
    %v100 = vunpack.c.l.b16 %v83
    %v101 = vunpack.c.l.b16 %v84
    %v102 = vunpack.c.l.b16 %v85
    %v103 = vpack.c.b16 %v100, %v99
    %v104 = vpack.c.b16 %v102, %v101
    %vm107 = vcmask 261120
    %v109 = vsel %vm107, 0, 0
    %111 = vmatpush.bf16.msra.mxu0 0
    %112 = vmatpush.bf16.msra.mxu0 0
    %113 = vmatpush.bf16.msra.mxu0 0
    %114 = vmatpush.bf16.msra.mxu0 0
    %115 = vmatpush.bf16.msra.mxu0 0
    %116 = vmatpush.bf16.msra.mxu0 0
    %117 = vmatpush.bf16.msra.mxu0 %v104
    %118 = vmatpush.bf16.msra.mxu0 %v103
    %119 = vmatmul.bf16.gmra.mxu0 %v109
    %v120 = vpop.f32.mrf.mxu0
    %v121 = vadd.f32 0.0, %v120
    %v122 = vpop.f32.mrf.mxu0
    %123 = vdwg.mxu0
    %v124 = vadd.f32 %v78, %v121
    %v125 = vxor.u32 %v124, 2147483648
    %v126 = vmul.f32 %v125, 1.442695
    %v127 = vpow.pop %v126
    %v128 = vadd.f32 %v127, 1.0
    %v129 = vrcp.pop %v128
    %v130 = vmul.f32 %v128, %v129
    %v131 = vsub.f32 1.0, %v130
    %v132 = vmul.f32 %v129, %v131
    %v133 = vadd.f32 %v129, %v132
    %vm134 = vweird.f32 %v128
    %vm135 = vweird.f32 %v129
    %vm136 = vmor %vm134, %vm135
    %v137 = vsel %vm136, %v129, %v133
    %v138 = vand.u32 2147483647, %v128
    %vm139 = vcmp.eq.f32.partialorder %v138, 8.507059e+37
    %v140 = vand.u32 %v128, 2147483648
    %v141 = vor.u32 1.1754944e-38, %v140
    %v142 = vsel %vm139, %v141, %v137
    %v143 = vmul.f32 1.0, %v142
    %v144 = vtanh.pop %v124
    %v145 = vmul.f32 %v143, 0.0
    %147 = vrot.lane.b32.xlu0 %v144, 64
    %v148 = vpop.permute.xlu0 %147
    %v150 = vmul.f32 %v143, %v148
    %152 = vrot.lane.b32.xlu0 %v150, 32
    %v153 = vpop.permute.xlu0 %152
    %v155 = vadd.f32 %v145, %v153
    %v156 = vtanh.pop %v155
    %158 = vrot.lane.b32.xlu0 %v156, 64
    %v159 = vpop.permute.xlu0 %158
    %v161 = vmul.f32 %v143, %v159
    %163 = vrot.lane.b32.xlu0 %v161, 32
    %v164 = vpop.permute.xlu0 %163
    %v166 = vsel %vm107, %v164, 0.0
    %v167 = vpack.c.bf16 %v166, %v166
    %v169 = vperm.slane %v94, 0
    %v179 = vunpack.c.l.b16 %v86
    %v180 = vunpack.c.l.b16 %v87
    %v181 = vunpack.c.l.b16 %v88
    %v182 = vunpack.c.l.b16 %v89
    %v183 = vunpack.c.l.b16 %v90
    %v184 = vunpack.c.l.b16 %v91
    %v185 = vunpack.c.l.b16 %v92
    %v186 = vunpack.c.l.b16 %v93
    %v187 = vpack.c.b16 %v180, %v179
    %v188 = vpack.c.b16 %v182, %v181
    %v189 = vpack.c.b16 %v184, %v183
    %v190 = vpack.c.b16 %v186, %v185
    %vm195 = vcmask 523264
    %v197 = vsel %vm195, %v167, 0
    %199 = vmatpush.bf16.msra.mxu0 0
    %200 = vmatpush.bf16.msra.mxu0 0
    %201 = vmatpush.bf16.msra.mxu0 0
    %202 = vmatpush.bf16.msra.mxu0 0
    %203 = vmatpush.bf16.msra.mxu0 %v190
    %204 = vmatpush.bf16.msra.mxu0 %v189
    %205 = vmatpush.bf16.msra.mxu0 %v188
    %206 = vmatpush.bf16.msra.mxu0 %v187
    %207 = vmatmul.bf16.gmra.mxu0 %v197
    %v208 = vpop.f32.mrf.mxu0
    %v209 = vadd.f32 %v169, %v208
    %v210 = vpop.f32.mrf.mxu0
    %211 = vdwg.mxu0
    %v212 = vxor.u32 %v209, 2147483648
    %v213 = vmul.f32 %v212, 1.442695
    %v214 = vpow.pop %v213
    %v215 = vadd.f32 %v214, 1.0
    %v216 = vrcp.pop %v215
    %v217 = vmul.f32 %v215, %v216
    %v218 = vsub.f32 1.0, %v217
    %v219 = vmul.f32 %v216, %v218
    %v220 = vadd.f32 %v216, %v219
    %vm221 = vweird.f32 %v215
    %vm222 = vweird.f32 %v216
    %vm223 = vmor %vm221, %vm222
    %v224 = vsel %vm223, %v216, %v220
    %v225 = vand.u32 2147483647, %v215
    %vm226 = vcmp.eq.f32.partialorder %v225, 8.507059e+37
    %v227 = vand.u32 %v215, 2147483648
    %v228 = vor.u32 1.1754944e-38, %v227
    %v229 = vsel %vm226, %v228, %v224
    %v230 = vmul.f32 1.0, %v229
    %v231 = vtanh.pop %v209
    %v232 = vmul.f32 %v230, 0.0
    %234 = vrot.lane.b32.xlu0 %v231, 64
    %v235 = vpop.permute.xlu0 %234
    %v237 = vmul.f32 %v230, %v235
    %239 = vrot.lane.b32.xlu0 %v237, 32
    %v240 = vpop.permute.xlu0 %239
    %v242 = vadd.f32 %v232, %v240
    %v243 = vtanh.pop %v242
    %245 = vrot.lane.b32.xlu0 %v243, 64
    %v246 = vpop.permute.xlu0 %245
    %v248 = vmul.f32 %v230, %v246
    %v249 = vpack.c.bf16 %v161, %v161
    %251 = vrot.lane.b32.xlu0 %v249, 32
    %v252 = vpop.permute.xlu0 %251
    %v254 = vsel %vm107, %v252, 0
    %256 = vmatpush.bf16.msra.mxu0 0
    %257 = vmatpush.bf16.msra.mxu0 0
    %258 = vmatpush.bf16.msra.mxu0 0
    %259 = vmatpush.bf16.msra.mxu0 0
    %260 = vmatpush.bf16.msra.mxu0 0
    %261 = vmatpush.bf16.msra.mxu0 0
    %262 = vmatpush.bf16.msra.mxu0 %v104
    %263 = vmatpush.bf16.msra.mxu0 %v103
    %264 = vmatmul.bf16.gmra.mxu0 %v254
    %v265 = vpop.f32.mrf.mxu0
    %v266 = vadd.f32 0.0, %v265
    %v267 = vpop.f32.mrf.mxu0
    %268 = vdwg.mxu0
    %v270 = vrot.slane %v266, 6
    %v272 = vadd.f32 %v78, %v270
    %v273 = vxor.u32 %v272, 2147483648
    %v274 = vmul.f32 %v273, 1.442695
    %v275 = vpow.pop %v274
    %v276 = vadd.f32 %v275, 1.0
    %v277 = vrcp.pop %v276
    %v278 = vmul.f32 %v276, %v277
    %v279 = vsub.f32 1.0, %v278
    %v280 = vmul.f32 %v277, %v279
    %v281 = vadd.f32 %v277, %v280
    %vm282 = vweird.f32 %v276
    %vm283 = vweird.f32 %v277
    %vm284 = vmor %vm282, %vm283
    %v285 = vsel %vm284, %v277, %v281
    %v286 = vand.u32 2147483647, %v276
    %vm287 = vcmp.eq.f32.partialorder %v286, 8.507059e+37
    %v288 = vand.u32 %v276, 2147483648
    %v289 = vor.u32 1.1754944e-38, %v288
    %v290 = vsel %vm287, %v289, %v285
    %v291 = vmul.f32 1.0, %v290
    %v292 = vtanh.pop %v272
    %v294 = vrot.slane %v155, 6
    %v296 = vmul.f32 %v291, %v294
    %298 = vrot.lane.b32.xlu0 %v292, 64
    %v299 = vpop.permute.xlu0 %298
    %v301 = vmul.f32 %v291, %v299
    %303 = vrot.lane.b32.xlu0 %v301, 32
    %v304 = vpop.permute.xlu0 %303
    %v306 = vadd.f32 %v296, %v304
    %v307 = vtanh.pop %v306
    %309 = vrot.lane.b32.xlu0 %v307, 64
    %v310 = vpop.permute.xlu0 %309
    %v312 = vmul.f32 %v291, %v310
    %314 = vrot.lane.b32.xlu0 %v312, 32
    %v315 = vpop.permute.xlu0 %314
    %v318 = vrot.slane %v248, 6
    %319 = vrot.lane.b32.xlu0 %v318, 64
    %v320 = vpop.permute.xlu0 %319
    %v322 = vsel %vm107, %v315, %v320
    %v323 = vpack.c.bf16 %v322, %v322
    %v325 = vrot.slane %v323, 1
    %v327 = vsel %vm195, %v325, 0
    %329 = vmatpush.bf16.msra.mxu0 0
    %330 = vmatpush.bf16.msra.mxu0 0
    %331 = vmatpush.bf16.msra.mxu0 0
    %332 = vmatpush.bf16.msra.mxu0 0
    %333 = vmatpush.bf16.msra.mxu0 %v190
    %334 = vmatpush.bf16.msra.mxu0 %v189
    %335 = vmatpush.bf16.msra.mxu0 %v188
    %336 = vmatpush.bf16.msra.mxu0 %v187
    %337 = vmatmul.bf16.gmra.mxu0 %v327
    %v338 = vpop.f32.mrf.mxu0
    %v339 = vadd.f32 %v169, %v338
    %v340 = vpop.f32.mrf.mxu0
    %341 = vdwg.mxu0
    %v342 = vxor.u32 %v339, 2147483648
    %v343 = vmul.f32 %v342, 1.442695
    %v344 = vpow.pop %v343
    %v345 = vadd.f32 %v344, 1.0
    %v346 = vrcp.pop %v345
    %v347 = vmul.f32 %v345, %v346
    %v348 = vsub.f32 1.0, %v347
    %v349 = vmul.f32 %v346, %v348
    %v350 = vadd.f32 %v346, %v349
    %vm351 = vweird.f32 %v345
    %vm352 = vweird.f32 %v346
    %vm353 = vmor %vm351, %vm352
    %v354 = vsel %vm353, %v346, %v350
    %v355 = vand.u32 2147483647, %v345
    %vm356 = vcmp.eq.f32.partialorder %v355, 8.507059e+37
    %v357 = vand.u32 %v345, 2147483648
    %v358 = vor.u32 1.1754944e-38, %v357
    %v359 = vsel %vm356, %v358, %v354
    %v360 = vmul.f32 1.0, %v359
    %v361 = vtanh.pop %v339
    %v362 = vmul.f32 %v360, %v242
    %364 = vrot.lane.b32.xlu0 %v361, 64
    %v365 = vpop.permute.xlu0 %364
    %v367 = vmul.f32 %v360, %v365
    %369 = vrot.lane.b32.xlu0 %v367, 32
    %v370 = vpop.permute.xlu0 %369
    %v372 = vadd.f32 %v362, %v370
    %v373 = vtanh.pop %v372
    %375 = vrot.lane.b32.xlu0 %v373, 64
    %v376 = vpop.permute.xlu0 %375
    %v378 = vmul.f32 %v360, %v376
    %v379 = vpack.c.bf16 %v312, %v312
    %v381 = vrot.slane %v379, 1
    %382 = vrot.lane.b32.xlu0 %v381, 32
    %v383 = vpop.permute.xlu0 %382
    %v385 = vsel %vm107, %v383, 0
    %387 = vmatpush.bf16.msra.mxu0 0
    %388 = vmatpush.bf16.msra.mxu0 0
    %389 = vmatpush.bf16.msra.mxu0 0
    %390 = vmatpush.bf16.msra.mxu0 0
    %391 = vmatpush.bf16.msra.mxu0 0
    %392 = vmatpush.bf16.msra.mxu0 0
    %393 = vmatpush.bf16.msra.mxu0 %v104
    %394 = vmatpush.bf16.msra.mxu0 %v103
    %395 = vmatmul.bf16.gmra.mxu0 %v385
    %v396 = vpop.f32.mrf.mxu0
    %v397 = vadd.f32 0.0, %v396
    %v398 = vpop.f32.mrf.mxu0
    %399 = vdwg.mxu0
    %v401 = vrot.slane %v397, 4
    %v403 = vadd.f32 %v78, %v401
    %v404 = vxor.u32 %v403, 2147483648
    %v405 = vmul.f32 %v404, 1.442695
    %v406 = vpow.pop %v405
    %v407 = vadd.f32 %v406, 1.0
    %v408 = vrcp.pop %v407
    %v409 = vmul.f32 %v407, %v408
    %v410 = vsub.f32 1.0, %v409
    %v411 = vmul.f32 %v408, %v410
    %v412 = vadd.f32 %v408, %v411
    %vm413 = vweird.f32 %v407
    %vm414 = vweird.f32 %v408
    %vm415 = vmor %vm413, %vm414
    %v416 = vsel %vm415, %v408, %v412
    %v417 = vand.u32 2147483647, %v407
    %vm418 = vcmp.eq.f32.partialorder %v417, 8.507059e+37
    %v419 = vand.u32 %v407, 2147483648
    %v420 = vor.u32 1.1754944e-38, %v419
    %v421 = vsel %vm418, %v420, %v416
    %v422 = vmul.f32 1.0, %v421
    %v423 = vtanh.pop %v403
    %v425 = vrot.slane %v306, 6
    %v427 = vmul.f32 %v422, %v425
    %429 = vrot.lane.b32.xlu0 %v423, 64
    %v430 = vpop.permute.xlu0 %429
    %v432 = vmul.f32 %v422, %v430
    %434 = vrot.lane.b32.xlu0 %v432, 32
    %v435 = vpop.permute.xlu0 %434
    %v437 = vadd.f32 %v427, %v435
    %v438 = vtanh.pop %v437
    %440 = vrot.lane.b32.xlu0 %v438, 64
    %v441 = vpop.permute.xlu0 %440
    %v443 = vmul.f32 %v422, %v441
    %445 = vrot.lane.b32.xlu0 %v443, 32
    %v446 = vpop.permute.xlu0 %445
    %v449 = vrot.slane %v378, 4
    %450 = vrot.lane.b32.xlu0 %v449, 64
    %v451 = vpop.permute.xlu0 %450
    %v453 = vsel %vm107, %v446, %v451
    %v454 = vpack.c.bf16 %v453, %v453
    %v456 = vrot.slane %v454, 2
    %v458 = vsel %vm195, %v456, 0
    %460 = vmatpush.bf16.msra.mxu0 0
    %461 = vmatpush.bf16.msra.mxu0 0
    %462 = vmatpush.bf16.msra.mxu0 0
    %463 = vmatpush.bf16.msra.mxu0 0
    %464 = vmatpush.bf16.msra.mxu0 %v190
    %465 = vmatpush.bf16.msra.mxu0 %v189
    %466 = vmatpush.bf16.msra.mxu0 %v188
    %467 = vmatpush.bf16.msra.mxu0 %v187
    %468 = vmatmul.bf16.gmra.mxu0 %v458
    %v469 = vpop.f32.mrf.mxu0
    %v470 = vadd.f32 %v169, %v469
    %v471 = vpop.f32.mrf.mxu0
    %472 = vdwg.mxu0
    %v473 = vxor.u32 %v470, 2147483648
    %v474 = vmul.f32 %v473, 1.442695
    %v475 = vpow.pop %v474
    %v476 = vadd.f32 %v475, 1.0
    %v477 = vrcp.pop %v476
    %v478 = vmul.f32 %v476, %v477
    %v479 = vsub.f32 1.0, %v478
    %v480 = vmul.f32 %v477, %v479
    %v481 = vadd.f32 %v477, %v480
    %vm482 = vweird.f32 %v476
    %vm483 = vweird.f32 %v477
    %vm484 = vmor %vm482, %vm483
    %v485 = vsel %vm484, %v477, %v481
    %v486 = vand.u32 2147483647, %v476
    %vm487 = vcmp.eq.f32.partialorder %v486, 8.507059e+37
    %v488 = vand.u32 %v476, 2147483648
    %v489 = vor.u32 1.1754944e-38, %v488
    %v490 = vsel %vm487, %v489, %v485
    %v491 = vmul.f32 1.0, %v490
    %v492 = vtanh.pop %v470
    %v493 = vmul.f32 %v491, %v372
    %495 = vrot.lane.b32.xlu0 %v492, 64
    %v496 = vpop.permute.xlu0 %495
    %v498 = vmul.f32 %v491, %v496
    %500 = vrot.lane.b32.xlu0 %v498, 32
    %v501 = vpop.permute.xlu0 %500
    %v503 = vadd.f32 %v493, %v501
    %v504 = vtanh.pop %v503
    %506 = vrot.lane.b32.xlu0 %v504, 64
    %v507 = vpop.permute.xlu0 %506
    %v509 = vmul.f32 %v491, %v507
    %v510 = vpack.c.bf16 %v443, %v443
    %v512 = vrot.slane %v510, 2
    %513 = vrot.lane.b32.xlu0 %v512, 32
    %v514 = vpop.permute.xlu0 %513
    %v516 = vsel %vm107, %v514, 0
    %518 = vmatpush.bf16.msra.mxu0 0
    %519 = vmatpush.bf16.msra.mxu0 0
    %520 = vmatpush.bf16.msra.mxu0 0
    %521 = vmatpush.bf16.msra.mxu0 0
    %522 = vmatpush.bf16.msra.mxu0 0
    %523 = vmatpush.bf16.msra.mxu0 0
    %524 = vmatpush.bf16.msra.mxu0 %v104
    %525 = vmatpush.bf16.msra.mxu0 %v103
    %526 = vmatmul.bf16.gmra.mxu0 %v516
    %v527 = vpop.f32.mrf.mxu0
    %v528 = vadd.f32 0.0, %v527
    %v529 = vpop.f32.mrf.mxu0
    %530 = vdwg.mxu0
    %v532 = vrot.slane %v528, 2
    %v534 = vadd.f32 %v78, %v532
    %v535 = vxor.u32 %v534, 2147483648
    %v536 = vmul.f32 %v535, 1.442695
    %v537 = vpow.pop %v536
    %v538 = vadd.f32 %v537, 1.0
    %v539 = vrcp.pop %v538
    %v540 = vmul.f32 %v538, %v539
    %v541 = vsub.f32 1.0, %v540
    %v542 = vmul.f32 %v539, %v541
    %v543 = vadd.f32 %v539, %v542
    %vm544 = vweird.f32 %v538
    %vm545 = vweird.f32 %v539
    %vm546 = vmor %vm544, %vm545
    %v547 = vsel %vm546, %v539, %v543
    %v548 = vand.u32 2147483647, %v538
    %vm549 = vcmp.eq.f32.partialorder %v548, 8.507059e+37
    %v550 = vand.u32 %v538, 2147483648
    %v551 = vor.u32 1.1754944e-38, %v550
    %v552 = vsel %vm549, %v551, %v547
    %v553 = vmul.f32 1.0, %v552
    %v554 = vtanh.pop %v534
    %v556 = vrot.slane %v437, 6
    %v558 = vmul.f32 %v553, %v556
    %560 = vrot.lane.b32.xlu0 %v554, 64
    %v561 = vpop.permute.xlu0 %560
    %v563 = vmul.f32 %v553, %v561
    %565 = vrot.lane.b32.xlu0 %v563, 32
    %v566 = vpop.permute.xlu0 %565
    %v568 = vadd.f32 %v558, %v566
    %v569 = vtanh.pop %v568
    %571 = vrot.lane.b32.xlu0 %v569, 64
    %v572 = vpop.permute.xlu0 %571
    %v574 = vmul.f32 %v553, %v572
    %576 = vrot.lane.b32.xlu0 %v574, 32
    %v577 = vpop.permute.xlu0 %576
    %v580 = vrot.slane %v509, 2
    %581 = vrot.lane.b32.xlu0 %v580, 64
    %v582 = vpop.permute.xlu0 %581
    %v584 = vsel %vm107, %v577, %v582
    %v585 = vpack.c.bf16 %v584, %v584
    %v587 = vrot.slane %v585, 3
    %v589 = vsel %vm195, %v587, 0
    %591 = vmatpush.bf16.msra.mxu0 0
    %592 = vmatpush.bf16.msra.mxu0 0
    %593 = vmatpush.bf16.msra.mxu0 0
    %594 = vmatpush.bf16.msra.mxu0 0
    %595 = vmatpush.bf16.msra.mxu0 %v190
    %596 = vmatpush.bf16.msra.mxu0 %v189
    %597 = vmatpush.bf16.msra.mxu0 %v188
    %598 = vmatpush.bf16.msra.mxu0 %v187
    %599 = vmatmul.bf16.gmra.mxu0 %v589
    %v600 = vpop.f32.mrf.mxu0
    %v601 = vadd.f32 %v169, %v600
    %v602 = vpop.f32.mrf.mxu0
    %603 = vdwg.mxu0
    %v604 = vxor.u32 %v601, 2147483648
    %v605 = vmul.f32 %v604, 1.442695
    %v606 = vpow.pop %v605
    %v607 = vadd.f32 %v606, 1.0
    %v608 = vrcp.pop %v607
    %v609 = vmul.f32 %v607, %v608
    %v610 = vsub.f32 1.0, %v609
    %v611 = vmul.f32 %v608, %v610
    %v612 = vadd.f32 %v608, %v611
    %vm613 = vweird.f32 %v607
    %vm614 = vweird.f32 %v608
    %vm615 = vmor %vm613, %vm614
    %v616 = vsel %vm615, %v608, %v612
    %v617 = vand.u32 2147483647, %v607
    %vm618 = vcmp.eq.f32.partialorder %v617, 8.507059e+37
    %v619 = vand.u32 %v607, 2147483648
    %v620 = vor.u32 1.1754944e-38, %v619
    %v621 = vsel %vm618, %v620, %v616
    %v622 = vmul.f32 1.0, %v621
    %v623 = vtanh.pop %v601
    %v624 = vmul.f32 %v622, %v503
    %626 = vrot.lane.b32.xlu0 %v623, 64
    %v627 = vpop.permute.xlu0 %626
    %v629 = vmul.f32 %v622, %v627
    %631 = vrot.lane.b32.xlu0 %v629, 32
    %v632 = vpop.permute.xlu0 %631
    %v634 = vadd.f32 %v624, %v632
    %v635 = vtanh.pop %v634
    %637 = vrot.lane.b32.xlu0 %v635, 64
    %v638 = vpop.permute.xlu0 %637
    %v640 = vmul.f32 %v622, %v638
    %v641 = vpack.c.bf16 %v574, %v574
    %v643 = vrot.slane %v641, 3
    %644 = vrot.lane.b32.xlu0 %v643, 32
    %v645 = vpop.permute.xlu0 %644
    %v647 = vsel %vm107, %v645, 0
    %649 = vmatpush.bf16.msra.mxu0 0
    %650 = vmatpush.bf16.msra.mxu0 0
    %651 = vmatpush.bf16.msra.mxu0 0
    %652 = vmatpush.bf16.msra.mxu0 0
    %653 = vmatpush.bf16.msra.mxu0 0
    %654 = vmatpush.bf16.msra.mxu0 0
    %655 = vmatpush.bf16.msra.mxu0 %v104
    %656 = vmatpush.bf16.msra.mxu0 %v103
    %657 = vmatmul.bf16.gmra.mxu0 %v647
    %v658 = vpop.f32.mrf.mxu0
    %v659 = vadd.f32 0.0, %v658
    %v660 = vpop.f32.mrf.mxu0
    %661 = vdwg.mxu0
    %v662 = vadd.f32 %v80, %v659
    %v663 = vxor.u32 %v662, 2147483648
    %v664 = vmul.f32 %v663, 1.442695
    %v665 = vpow.pop %v664
    %v666 = vadd.f32 %v665, 1.0
    %v667 = vrcp.pop %v666
    %v668 = vmul.f32 %v666, %v667
    %v669 = vsub.f32 1.0, %v668
    %v670 = vmul.f32 %v667, %v669
    %v671 = vadd.f32 %v667, %v670
    %vm672 = vweird.f32 %v666
    %vm673 = vweird.f32 %v667
    %vm674 = vmor %vm672, %vm673
    %v675 = vsel %vm674, %v667, %v671
    %v676 = vand.u32 2147483647, %v666
    %vm677 = vcmp.eq.f32.partialorder %v676, 8.507059e+37
    %v678 = vand.u32 %v666, 2147483648
    %v679 = vor.u32 1.1754944e-38, %v678
    %v680 = vsel %vm677, %v679, %v675
    %v681 = vmul.f32 1.0, %v680
    %v682 = vtanh.pop %v662
    %v684 = vrot.slane %v568, 6
    %v686 = vmul.f32 %v681, %v684
    %688 = vrot.lane.b32.xlu0 %v682, 64
    %v689 = vpop.permute.xlu0 %688
    %v691 = vmul.f32 %v681, %v689
    %693 = vrot.lane.b32.xlu0 %v691, 32
    %v694 = vpop.permute.xlu0 %693
    %v696 = vadd.f32 %v686, %v694
    %v697 = vtanh.pop %v696
    %699 = vrot.lane.b32.xlu0 %v697, 64
    %v700 = vpop.permute.xlu0 %699
    %v702 = vmul.f32 %v681, %v700
    %704 = vrot.lane.b32.xlu0 %v702, 32
    %v705 = vpop.permute.xlu0 %704
    %708 = vrot.lane.b32.xlu0 %v640, 64
    %v709 = vpop.permute.xlu0 %708
    %v711 = vsel %vm107, %v705, %v709
    %v712 = vpack.c.bf16 %v711, %v711
    %v714 = vsel %vm195, %v712, 0
    %716 = vmatpush.bf16.msra.mxu0 0
    %717 = vmatpush.bf16.msra.mxu0 0
    %718 = vmatpush.bf16.msra.mxu0 0
    %719 = vmatpush.bf16.msra.mxu0 0
    %720 = vmatpush.bf16.msra.mxu0 %v190
    %721 = vmatpush.bf16.msra.mxu0 %v189
    %722 = vmatpush.bf16.msra.mxu0 %v188
    %723 = vmatpush.bf16.msra.mxu0 %v187
    %724 = vmatmul.bf16.gmra.mxu0 %v714
    %v725 = vpop.f32.mrf.mxu0
    %v726 = vadd.f32 %v169, %v725
    %v727 = vpop.f32.mrf.mxu0
    %728 = vdwg.mxu0
    %v729 = vxor.u32 %v726, 2147483648
    %v730 = vmul.f32 %v729, 1.442695
    %v731 = vpow.pop %v730
    %v732 = vadd.f32 %v731, 1.0
    %v733 = vrcp.pop %v732
    %v734 = vmul.f32 %v732, %v733
    %v735 = vsub.f32 1.0, %v734
    %v736 = vmul.f32 %v733, %v735
    %v737 = vadd.f32 %v733, %v736
    %vm738 = vweird.f32 %v732
    %vm739 = vweird.f32 %v733
    %vm740 = vmor %vm738, %vm739
    %v741 = vsel %vm740, %v733, %v737
    %v742 = vand.u32 2147483647, %v732
    %vm743 = vcmp.eq.f32.partialorder %v742, 8.507059e+37
    %v744 = vand.u32 %v732, 2147483648
    %v745 = vor.u32 1.1754944e-38, %v744
    %v746 = vsel %vm743, %v745, %v741
    %v747 = vmul.f32 1.0, %v746
    %v748 = vtanh.pop %v726
    %v749 = vmul.f32 %v747, %v634
    %751 = vrot.lane.b32.xlu0 %v748, 64
    %v752 = vpop.permute.xlu0 %751
    %v754 = vmul.f32 %v747, %v752
    %756 = vrot.lane.b32.xlu0 %v754, 32
    %v757 = vpop.permute.xlu0 %756
    %v759 = vadd.f32 %v749, %v757
    %v760 = vtanh.pop %v759
    %762 = vrot.lane.b32.xlu0 %v760, 64
    %v763 = vpop.permute.xlu0 %762
    %v765 = vmul.f32 %v747, %v763
    %v766 = vpack.c.bf16 %v702, %v702
    %768 = vrot.lane.b32.xlu0 %v766, 32
    %v769 = vpop.permute.xlu0 %768
    %v771 = vsel %vm107, %v769, 0
    %773 = vmatpush.bf16.msra.mxu0 0
    %774 = vmatpush.bf16.msra.mxu0 0
    %775 = vmatpush.bf16.msra.mxu0 0
    %776 = vmatpush.bf16.msra.mxu0 0
    %777 = vmatpush.bf16.msra.mxu0 0
    %778 = vmatpush.bf16.msra.mxu0 0
    %779 = vmatpush.bf16.msra.mxu0 %v104
    %780 = vmatpush.bf16.msra.mxu0 %v103
    %781 = vmatmul.bf16.gmra.mxu0 %v771
    %v782 = vpop.f32.mrf.mxu0
    %v783 = vadd.f32 0.0, %v782
    %v784 = vpop.f32.mrf.mxu0
    %785 = vdwg.mxu0
    %v787 = vrot.slane %v783, 6
    %v789 = vadd.f32 %v80, %v787
    %v790 = vxor.u32 %v789, 2147483648
    %v791 = vmul.f32 %v790, 1.442695
    %v792 = vpow.pop %v791
    %v793 = vadd.f32 %v792, 1.0
    %v794 = vrcp.pop %v793
    %v795 = vmul.f32 %v793, %v794
    %v796 = vsub.f32 1.0, %v795
    %v797 = vmul.f32 %v794, %v796
    %v798 = vadd.f32 %v794, %v797
    %vm799 = vweird.f32 %v793
    %vm800 = vweird.f32 %v794
    %vm801 = vmor %vm799, %vm800
    %v802 = vsel %vm801, %v794, %v798
    %v803 = vand.u32 2147483647, %v793
    %vm804 = vcmp.eq.f32.partialorder %v803, 8.507059e+37
    %v805 = vand.u32 %v793, 2147483648
    %v806 = vor.u32 1.1754944e-38, %v805
    %v807 = vsel %vm804, %v806, %v802
    %v808 = vmul.f32 1.0, %v807
    %v809 = vtanh.pop %v789
    %v811 = vrot.slane %v696, 6
    %v813 = vmul.f32 %v808, %v811
    %815 = vrot.lane.b32.xlu0 %v809, 64
    %v816 = vpop.permute.xlu0 %815
    %v818 = vmul.f32 %v808, %v816
    %820 = vrot.lane.b32.xlu0 %v818, 32
    %v821 = vpop.permute.xlu0 %820
    %v823 = vadd.f32 %v813, %v821
    %v824 = vtanh.pop %v823
    %826 = vrot.lane.b32.xlu0 %v824, 64
    %v827 = vpop.permute.xlu0 %826
    %v829 = vmul.f32 %v808, %v827
    %831 = vrot.lane.b32.xlu0 %v829, 32
    %v832 = vpop.permute.xlu0 %831
    %v835 = vrot.slane %v765, 6
    %836 = vrot.lane.b32.xlu0 %v835, 64
    %v837 = vpop.permute.xlu0 %836
    %v839 = vsel %vm107, %v832, %v837
    %v840 = vpack.c.bf16 %v839, %v839
    %v842 = vrot.slane %v840, 1
    %v844 = vsel %vm195, %v842, 0
    %846 = vmatpush.bf16.msra.mxu0 0
    %847 = vmatpush.bf16.msra.mxu0 0
    %848 = vmatpush.bf16.msra.mxu0 0
    %849 = vmatpush.bf16.msra.mxu0 0
    %850 = vmatpush.bf16.msra.mxu0 %v190
    %851 = vmatpush.bf16.msra.mxu0 %v189
    %852 = vmatpush.bf16.msra.mxu0 %v188
    %853 = vmatpush.bf16.msra.mxu0 %v187
    %854 = vmatmul.bf16.gmra.mxu0 %v844
    %v855 = vpop.f32.mrf.mxu0
    %v856 = vadd.f32 %v169, %v855
    %v857 = vpop.f32.mrf.mxu0
    %858 = vdwg.mxu0
    %v859 = vxor.u32 %v856, 2147483648
    %v860 = vmul.f32 %v859, 1.442695
    %v861 = vpow.pop %v860
    %v862 = vadd.f32 %v861, 1.0
    %v863 = vrcp.pop %v862
    %v864 = vmul.f32 %v862, %v863
    %v865 = vsub.f32 1.0, %v864
    %v866 = vmul.f32 %v863, %v865
    %v867 = vadd.f32 %v863, %v866
    %vm868 = vweird.f32 %v862
    %vm869 = vweird.f32 %v863
    %vm870 = vmor %vm868, %vm869
    %v871 = vsel %vm870, %v863, %v867
    %v872 = vand.u32 2147483647, %v862
    %vm873 = vcmp.eq.f32.partialorder %v872, 8.507059e+37
    %v874 = vand.u32 %v862, 2147483648
    %v875 = vor.u32 1.1754944e-38, %v874
    %v876 = vsel %vm873, %v875, %v871
    %v877 = vmul.f32 1.0, %v876
    %v878 = vtanh.pop %v856
    %v879 = vmul.f32 %v877, %v759
    %881 = vrot.lane.b32.xlu0 %v878, 64
    %v882 = vpop.permute.xlu0 %881
    %v884 = vmul.f32 %v877, %v882
    %886 = vrot.lane.b32.xlu0 %v884, 32
    %v887 = vpop.permute.xlu0 %886
    %v889 = vadd.f32 %v879, %v887
    %v890 = vtanh.pop %v889
    %892 = vrot.lane.b32.xlu0 %v890, 64
    %v893 = vpop.permute.xlu0 %892
    %v895 = vmul.f32 %v877, %v893
    %v896 = vpack.c.bf16 %v829, %v829
    %v898 = vrot.slane %v896, 1
    %899 = vrot.lane.b32.xlu0 %v898, 32
    %v900 = vpop.permute.xlu0 %899
    %v902 = vsel %vm107, %v900, 0
    %904 = vmatpush.bf16.msra.mxu0 0
    %905 = vmatpush.bf16.msra.mxu0 0
    %906 = vmatpush.bf16.msra.mxu0 0
    %907 = vmatpush.bf16.msra.mxu0 0
    %908 = vmatpush.bf16.msra.mxu0 0
    %909 = vmatpush.bf16.msra.mxu0 0
    %910 = vmatpush.bf16.msra.mxu0 %v104
    %911 = vmatpush.bf16.msra.mxu0 %v103
    %912 = vmatmul.bf16.gmra.mxu0 %v902
    %v913 = vpop.f32.mrf.mxu0
    %v914 = vadd.f32 0.0, %v913
    %v915 = vpop.f32.mrf.mxu0
    %916 = vdwg.mxu0
    %v918 = vrot.slane %v914, 4
    %v920 = vadd.f32 %v80, %v918
    %v921 = vxor.u32 %v920, 2147483648
    %v922 = vmul.f32 %v921, 1.442695
    %v923 = vpow.pop %v922
    %v924 = vadd.f32 %v923, 1.0
    %v925 = vrcp.pop %v924
    %v926 = vmul.f32 %v924, %v925
    %v927 = vsub.f32 1.0, %v926
    %v928 = vmul.f32 %v925, %v927
    %v929 = vadd.f32 %v925, %v928
    %vm930 = vweird.f32 %v924
    %vm931 = vweird.f32 %v925
    %vm932 = vmor %vm930, %vm931
    %v933 = vsel %vm932, %v925, %v929
    %v934 = vand.u32 2147483647, %v924
    %vm935 = vcmp.eq.f32.partialorder %v934, 8.507059e+37
    %v936 = vand.u32 %v924, 2147483648
    %v937 = vor.u32 1.1754944e-38, %v936
    %v938 = vsel %vm935, %v937, %v933
    %v939 = vmul.f32 1.0, %v938
    %v940 = vtanh.pop %v920
    %v942 = vrot.slane %v823, 6
    %v944 = vmul.f32 %v939, %v942
    %946 = vrot.lane.b32.xlu0 %v940, 64
    %v947 = vpop.permute.xlu0 %946
    %v949 = vmul.f32 %v939, %v947
    %951 = vrot.lane.b32.xlu0 %v949, 32
    %v952 = vpop.permute.xlu0 %951
    %v954 = vadd.f32 %v944, %v952
    %v955 = vtanh.pop %v954
    %957 = vrot.lane.b32.xlu0 %v955, 64
    %v958 = vpop.permute.xlu0 %957
    %v960 = vmul.f32 %v939, %v958
    %962 = vrot.lane.b32.xlu0 %v960, 32
    %v963 = vpop.permute.xlu0 %962
    %v966 = vrot.slane %v895, 4
    %967 = vrot.lane.b32.xlu0 %v966, 64
    %v968 = vpop.permute.xlu0 %967
    %v970 = vsel %vm107, %v963, %v968
    %v971 = vpack.c.bf16 %v970, %v970
    %v973 = vrot.slane %v971, 2
    %v975 = vsel %vm195, %v973, 0
    %977 = vmatpush.bf16.msra.mxu0 0
    %978 = vmatpush.bf16.msra.mxu0 0
    %979 = vmatpush.bf16.msra.mxu0 0
    %980 = vmatpush.bf16.msra.mxu0 0
    %981 = vmatpush.bf16.msra.mxu0 %v190
    %982 = vmatpush.bf16.msra.mxu0 %v189
    %983 = vmatpush.bf16.msra.mxu0 %v188
    %984 = vmatpush.bf16.msra.mxu0 %v187
    %985 = vmatmul.bf16.gmra.mxu0 %v975
    %v986 = vpop.f32.mrf.mxu0
    %v987 = vadd.f32 %v169, %v986
    %v988 = vpop.f32.mrf.mxu0
    %989 = vdwg.mxu0
    %v990 = vxor.u32 %v987, 2147483648
    %v991 = vmul.f32 %v990, 1.442695
    %v992 = vpow.pop %v991
    %v993 = vadd.f32 %v992, 1.0
    %v994 = vrcp.pop %v993
    %v995 = vmul.f32 %v993, %v994
    %v996 = vsub.f32 1.0, %v995
    %v997 = vmul.f32 %v994, %v996
    %v998 = vadd.f32 %v994, %v997
    %vm999 = vweird.f32 %v993
    %vm1000 = vweird.f32 %v994
    %vm1001 = vmor %vm999, %vm1000
    %v1002 = vsel %vm1001, %v994, %v998
    %v1003 = vand.u32 2147483647, %v993
    %vm1004 = vcmp.eq.f32.partialorder %v1003, 8.507059e+37
    %v1005 = vand.u32 %v993, 2147483648
    %v1006 = vor.u32 1.1754944e-38, %v1005
    %v1007 = vsel %vm1004, %v1006, %v1002
    %v1008 = vmul.f32 1.0, %v1007
    %v1009 = vtanh.pop %v987
    %v1010 = vmul.f32 %v1008, %v889
    %1012 = vrot.lane.b32.xlu0 %v1009, 64
    %v1013 = vpop.permute.xlu0 %1012
    %v1015 = vmul.f32 %v1008, %v1013
    %1017 = vrot.lane.b32.xlu0 %v1015, 32
    %v1018 = vpop.permute.xlu0 %1017
    %v1020 = vadd.f32 %v1010, %v1018
    %v1021 = vtanh.pop %v1020
    %1023 = vrot.lane.b32.xlu0 %v1021, 64
    %v1024 = vpop.permute.xlu0 %1023
    %v1026 = vmul.f32 %v1008, %v1024
    %v1027 = vpack.c.bf16 %v960, %v960
    %v1029 = vrot.slane %v1027, 2
    %1030 = vrot.lane.b32.xlu0 %v1029, 32
    %v1031 = vpop.permute.xlu0 %1030
    %v1033 = vsel %vm107, %v1031, 0
    %1035 = vmatpush.bf16.msra.mxu0 0
    %1036 = vmatpush.bf16.msra.mxu0 0
    %1037 = vmatpush.bf16.msra.mxu0 0
    %1038 = vmatpush.bf16.msra.mxu0 0
    %1039 = vmatpush.bf16.msra.mxu0 0
    %1040 = vmatpush.bf16.msra.mxu0 0
    %1041 = vmatpush.bf16.msra.mxu0 %v104
    %1042 = vmatpush.bf16.msra.mxu0 %v103
    %1043 = vmatmul.bf16.gmra.mxu0 %v1033
    %v1044 = vpop.f32.mrf.mxu0
    %v1045 = vadd.f32 0.0, %v1044
    %v1046 = vpop.f32.mrf.mxu0
    %1047 = vdwg.mxu0
    %v1049 = vrot.slane %v1045, 2
    %v1051 = vadd.f32 %v80, %v1049
    %v1052 = vxor.u32 %v1051, 2147483648
    %v1053 = vmul.f32 %v1052, 1.442695
    %v1054 = vpow.pop %v1053
    %v1055 = vadd.f32 %v1054, 1.0
    %v1056 = vrcp.pop %v1055
    %v1057 = vmul.f32 %v1055, %v1056
    %v1058 = vsub.f32 1.0, %v1057
    %v1059 = vmul.f32 %v1056, %v1058
    %v1060 = vadd.f32 %v1056, %v1059
    %vm1061 = vweird.f32 %v1055
    %vm1062 = vweird.f32 %v1056
    %vm1063 = vmor %vm1061, %vm1062
    %v1064 = vsel %vm1063, %v1056, %v1060
    %v1065 = vand.u32 2147483647, %v1055
    %vm1066 = vcmp.eq.f32.partialorder %v1065, 8.507059e+37
    %v1067 = vand.u32 %v1055, 2147483648
    %v1068 = vor.u32 1.1754944e-38, %v1067
    %v1069 = vsel %vm1066, %v1068, %v1064
    %v1070 = vmul.f32 1.0, %v1069
    %v1071 = vtanh.pop %v1051
    %v1073 = vrot.slane %v954, 6
    %v1075 = vmul.f32 %v1070, %v1073
    %1077 = vrot.lane.b32.xlu0 %v1071, 64
    %v1078 = vpop.permute.xlu0 %1077
    %v1080 = vmul.f32 %v1070, %v1078
    %1082 = vrot.lane.b32.xlu0 %v1080, 32
    %v1083 = vpop.permute.xlu0 %1082
    %v1085 = vadd.f32 %v1075, %v1083
    %v1086 = vtanh.pop %v1085
    %1088 = vrot.lane.b32.xlu0 %v1086, 64
    %v1089 = vpop.permute.xlu0 %1088
    %v1091 = vmul.f32 %v1070, %v1089
    %1093 = vrot.lane.b32.xlu0 %v1091, 32
    %v1094 = vpop.permute.xlu0 %1093
    %v1097 = vrot.slane %v1026, 2
    %1098 = vrot.lane.b32.xlu0 %v1097, 64
    %v1099 = vpop.permute.xlu0 %1098
    %v1101 = vsel %vm107, %v1094, %v1099
    %v1102 = vpack.c.bf16 %v1101, %v1101
    %v1104 = vrot.slane %v1102, 3
    %v1106 = vsel %vm195, %v1104, 0
    %1108 = vmatpush.bf16.msra.mxu0 0
    %1109 = vmatpush.bf16.msra.mxu0 0
    %1110 = vmatpush.bf16.msra.mxu0 0
    %1111 = vmatpush.bf16.msra.mxu0 0
    %1112 = vmatpush.bf16.msra.mxu0 %v190
    %1113 = vmatpush.bf16.msra.mxu0 %v189
    %1114 = vmatpush.bf16.msra.mxu0 %v188
    %1115 = vmatpush.bf16.msra.mxu0 %v187
    %1116 = vmatmul.bf16.gmra.mxu0 %v1106
    %v1117 = vpop.f32.mrf.mxu0
    %v1118 = vadd.f32 %v169, %v1117
    %v1119 = vpop.f32.mrf.mxu0
    %1120 = vdwg.mxu0
    %v1121 = vxor.u32 %v1118, 2147483648
    %v1122 = vmul.f32 %v1121, 1.442695
    %v1123 = vpow.pop %v1122
    %v1124 = vadd.f32 %v1123, 1.0
    %v1125 = vrcp.pop %v1124
    %v1126 = vmul.f32 %v1124, %v1125
    %v1127 = vsub.f32 1.0, %v1126
    %v1128 = vmul.f32 %v1125, %v1127
    %v1129 = vadd.f32 %v1125, %v1128
    %vm1130 = vweird.f32 %v1124
    %vm1131 = vweird.f32 %v1125
    %vm1132 = vmor %vm1130, %vm1131
    %v1133 = vsel %vm1132, %v1125, %v1129
    %v1134 = vand.u32 2147483647, %v1124
    %vm1135 = vcmp.eq.f32.partialorder %v1134, 8.507059e+37
    %v1136 = vand.u32 %v1124, 2147483648
    %v1137 = vor.u32 1.1754944e-38, %v1136
    %v1138 = vsel %vm1135, %v1137, %v1133
    %v1139 = vmul.f32 1.0, %v1138
    %v1140 = vtanh.pop %v1118
    %v1141 = vmul.f32 %v1139, %v1020
    %1143 = vrot.lane.b32.xlu0 %v1140, 64
    %v1144 = vpop.permute.xlu0 %1143
    %v1146 = vmul.f32 %v1139, %v1144
    %1148 = vrot.lane.b32.xlu0 %v1146, 32
    %v1149 = vpop.permute.xlu0 %1148
    %v1151 = vadd.f32 %v1141, %v1149
    %v1152 = vtanh.pop %v1151
    %1154 = vrot.lane.b32.xlu0 %v1152, 64
    %v1155 = vpop.permute.xlu0 %1154
    %v1157 = vmul.f32 %v1139, %v1155
    %v1158 = vpack.c.bf16 %v1157, %v1157
    %v1159 = vld [vmem:[%s6] sm:$0xf]
    %v1160 = vld [vmem:[%s6 + $0x4] sm:$0xf]
    %v1161 = vld [vmem:[%s6 + $0x8] sm:$0xf]
    %v1162 = vld [vmem:[%s6 + $0xc] sm:$0xf]
    %v1163 = vld [vmem:[#allocation2] sm:$0x1]
    %v1165 = vperm.slane %v1163, 0
    %1168 = vrot.lane.b32.xlu0 %v1158, 32
    %v1169 = vpop.permute.xlu0 %1168
    %v1174 = vunpack.c.l.b16 %v1159
    %v1175 = vunpack.c.l.b16 %v1160
    %v1176 = vunpack.c.l.b16 %v1161
    %v1177 = vunpack.c.l.b16 %v1162
    %v1178 = vpack.c.b16 %v1175, %v1174
    %v1179 = vpack.c.b16 %v1177, %v1176
    %v1183 = vsel %vm107, %v1169, 0
    %1185 = vmatpush.bf16.msra.mxu0 0
    %1186 = vmatpush.bf16.msra.mxu0 0
    %1187 = vmatpush.bf16.msra.mxu0 0
    %1188 = vmatpush.bf16.msra.mxu0 0
    %1189 = vmatpush.bf16.msra.mxu0 0
    %1190 = vmatpush.bf16.msra.mxu0 0
    %1191 = vmatpush.bf16.msra.mxu0 %v1179
    %1192 = vmatpush.bf16.msra.mxu0 %v1178
    %1193 = vmatmul.bf16.gmra.mxu0 %v1183
    %v1194 = vpop.f32.mrf.mxu0
    %v1195 = vadd.f32 %v1165, %v1194
    %v1196 = vpop.f32.mrf.mxu0
    %1197 = vdwg.mxu0
    %vm1198 = vcmask 74752
    %1199 = vst.msk [vmem:[#allocation5] sm:$0x3] %vm1198, %v1195
    // Predicated region
    $region38: #{custom_lstm_forward.1} parent=1 // pred_check
      _
    $region39: #{custom_lstm_forward.1} parent=1 // pred_check_branch
      %1201 = sbr.rel (0) target = $region41
    $region40: #{custom_lstm_forward.1} parent=1 // pred_region
      %1203 = vsyncadd [#allocation4], 0
      %s1205 = sshll.u32 [#allocation5], 4
      %s1206 = int_to_ptr.vmem [resolvable:$true] %s1205
      %s1207 = sshll.u32 %s8, 4
      %s1208 = int_to_ptr.hbm [resolvable:$true] %s1207
      %1210 = dma.vmem_to_hbm [thread:$0]  %s1206, 32, %s1208, [#allocation4]
    $region41: #{custom_lstm_forward.1} parent=1 // pred_fallthru
      _
    // Predicated region
    $region42: #{custom_lstm_forward.1} parent=1 // pred_check
      _
    $region43: #{custom_lstm_forward.1} parent=1 // pred_check_branch
      %1212 = sbr.rel (0) target = $region45
    $region44: #{custom_lstm_forward.1} parent=1 // pred_region
      %1214 = dma.done [#allocation4], 32
    $region45: #{custom_lstm_forward.1} parent=1 // pred_fallthru
      _
    %1215 = vsyncpa [#allocation3], 1
    %1216 = vsyncpa [#allocation4], 1

</llo_original>
